<compile_context>
chip_gen: v7x
topology: tpu7x:2x2x1
jax: 0.10.0
libtpu: 0.0.40
codegen_flags: <defaults>
</compile_context>

<pallas_src>
import functools
import math

import numpy as np
import jax
import jax.numpy as jnp
from jax.experimental import pallas as pl
from jax.experimental.pallas import tpu as pltpu

LAYER_EPS = 1e-5       # nn.LayerNorm default eps used by the MHA / FFN LayerNorms
MASK_VALUE = -1e30     # finite "-inf": exp(MASK_VALUE - rowmax) == 0, no NaN risk
KV_CHUNK = 512         # flash-style Lk chunk size (static); full Lk when smaller
VMEM_LIMIT_BYTES = 48 * 1024 * 1024   # > 16/32 MiB defaults, < v7x 64 MiB physical


# ----------------------------------------------------------------------------
# shared math helpers (used inside kernels; reference mirrors the same casts)
# ----------------------------------------------------------------------------
def _layer_norm_f32(x, gamma, beta, eps):
    x = x.astype(jnp.float32)
    mu = jnp.mean(x, axis=-1, keepdims=True)
    var = jnp.mean((x - mu) ** 2, axis=-1, keepdims=True)
    return (x - mu) * jax.lax.rsqrt(var + eps) * gamma + beta


def _flash_head(Qh, Kh, Vh, kpad_row, *, causal):
    # Qh: (Lq, dk) f32 (already scaled); Kh, Vh: (Lk, dk) f32;
    # kpad_row: (1, Lk) f32 with 1.0 == padded key.
    # Online softmax over Lk chunks: largest intermediate is (Lq, KV_CHUNK) f32.
    Lq, d_k = Qh.shape
    Lk = Kh.shape[0]
    q16 = Qh.astype(jnp.bfloat16)
    qi = jax.lax.broadcasted_iota(jnp.int32, (Lq, 1), 0)
    m = jnp.full((Lq, 1), MASK_VALUE, jnp.float32)
    l = jnp.zeros((Lq, 1), jnp.float32)
    acc = jnp.zeros((Lq, d_k), jnp.float32)
    for c0 in range(0, Lk, KV_CHUNK):
        c1 = min(c0 + KV_CHUNK, Lk)
        k16 = Kh[c0:c1].astype(jnp.bfloat16)
        v16 = Vh[c0:c1].astype(jnp.bfloat16)
        s = jax.lax.dot_general(q16, k16, (((1,), (1,)), ((), ())),
                                preferred_element_type=jnp.float32)   # (Lq, ck)
        mask = jnp.broadcast_to(kpad_row[:, c0:c1], s.shape) > 0
        if causal:
            ki = c0 + jax.lax.broadcasted_iota(jnp.int32, s.shape, 1)
            mask = jnp.logical_or(mask, ki > qi)
        s = jnp.where(mask, MASK_VALUE, s)
        m_new = jnp.maximum(m, jnp.max(s, axis=-1, keepdims=True))
        alpha = jnp.exp(m - m_new)
        p = jnp.exp(s - m_new)
        l = alpha * l + jnp.sum(p, axis=-1, keepdims=True)
        acc = alpha * acc + jnp.dot(p.astype(jnp.bfloat16), v16,
                                    preferred_element_type=jnp.float32)
        m = m_new
    # TODO(synk): pl.reciprocal(l, approx=True) would move this onto the EUP slot.
    return acc * (1.0 / l)                                            # (Lq, dk) f32


def _mha_core(residual_f32, Q, K, V, kpad_row, wo3, bo, g, b,
              *, n_head, d_k, eps, causal):
    # Q (Lq, H*dk) f32 already scaled; K, V (Lk, H*dk) f32; wo3 (H, dk, D) bf16.
    # Per-head flash attention + per-head output-projection accumulation
    # (no head stack / concat relayouts).
    Lq = Q.shape[0]
    D = wo3.shape[-1]
    out = jnp.zeros((Lq, D), jnp.float32)
    for h in range(n_head):
        sl = slice(h * d_k, (h + 1) * d_k)
        ctx = _flash_head(Q[:, sl], K[:, sl], V[:, sl], kpad_row, causal=causal)
        out = out + jnp.dot(ctx.astype(jnp.bfloat16), wo3[h],
                            preferred_element_type=jnp.float32)
    out = out + bo
    return _layer_norm_f32(out + residual_f32, g, b, eps)            # f32


def _self_attn_block(x, kpad_row, w_qkv, b_qkv, wo3, bo, g, b,
                     *, n_head, d_k, scale, eps, causal):
    hd = n_head * d_k
    x16 = x.astype(jnp.bfloat16)
    qkv = jnp.dot(x16, w_qkv, preferred_element_type=jnp.float32) + b_qkv
    Q = qkv[:, :hd] * scale          # fold 1/sqrt(d_k) into Q, not the scores
    K = qkv[:, hd:2 * hd]
    V = qkv[:, 2 * hd:]
    return _mha_core(x.astype(jnp.float32), Q, K, V, kpad_row, wo3, bo, g, b,
                     n_head=n_head, d_k=d_k, eps=eps, causal=causal)


def _cross_attn_block(xq, x_kv, kpad_row, wq, bq, wkv, bkv, wo3, bo, g, b,
                      *, n_head, d_k, scale, eps):
    hd = n_head * d_k
    q16 = xq.astype(jnp.bfloat16)
    kv16 = x_kv.astype(jnp.bfloat16)
    Q = (jnp.dot(q16, wq, preferred_element_type=jnp.float32) + bq) * scale
    kv = jnp.dot(kv16, wkv, preferred_element_type=jnp.float32) + bkv
    K, V = kv[:, :hd], kv[:, hd:]
    return _mha_core(xq.astype(jnp.float32), Q, K, V, kpad_row, wo3, bo, g, b,
                     n_head=n_head, d_k=d_k, eps=eps, causal=False)


def _ffn_block(x, w1, b1, w2, b2, g, b, *, eps):
    x16 = x.astype(jnp.bfloat16)
    h = jnp.maximum(jnp.dot(x16, w1, preferred_element_type=jnp.float32) + b1, 0.0)
    o = jnp.dot(h.astype(jnp.bfloat16), w2,
                preferred_element_type=jnp.float32) + b2
    return _layer_norm_f32(o + x.astype(jnp.float32), g, b, eps)


# ----------------------------------------------------------------------------
# Pallas kernels (one fused kernel per transformer layer + tiled projection)
# ----------------------------------------------------------------------------
def enc_layer_kernel(x_ref, kpad_ref, npm_ref,
                     a_wqkv, a_bqkv, a_wo3, a_bo, a_g, a_b,
                     f_w1, f_b1, f_w2, f_b2, f_g, f_b,
                     out_ref, *, n_head, d_k, scale, eps):
    x = x_ref[0]            # (Ls, D) bf16
    kpad = kpad_ref[0]      # (1, Ls) f32
    npm = npm_ref[0]        # (Ls, 1) f32
    y = _self_attn_block(x, kpad, a_wqkv[...], a_bqkv[...], a_wo3[...], a_bo[...],
                         a_g[...], a_b[...], n_head=n_head, d_k=d_k,
                         scale=scale, eps=eps, causal=False)
    y = y * npm
    y = _ffn_block(y, f_w1[...], f_b1[...], f_w2[...], f_b2[...],
                   f_g[...], f_b[...], eps=eps)
    y = y * npm
    out_ref[0] = y.astype(out_ref.dtype)


def dec_layer_kernel(x_ref, enc_ref, tkpad_ref, skpad_ref, npm_ref,
                     s_wqkv, s_bqkv, s_wo3, s_bo, s_g, s_b,
                     c_wq, c_bq, c_wkv, c_bkv, c_wo3, c_bo, c_g, c_b,
                     f_w1, f_b1, f_w2, f_b2, f_g, f_b,
                     out_ref, *, n_head, d_k, scale, eps):
    x = x_ref[0]            # (Lt, D) bf16
    enc = enc_ref[0]        # (Ls, D) bf16
    tkpad = tkpad_ref[0]    # (1, Lt) f32
    skpad = skpad_ref[0]    # (1, Ls) f32
    npm = npm_ref[0]        # (Lt, 1) f32
    # masked (causal + keypad) decoder self-attention
    y = _self_attn_block(x, tkpad, s_wqkv[...], s_bqkv[...], s_wo3[...], s_bo[...],
                         s_g[...], s_b[...], n_head=n_head, d_k=d_k,
                         scale=scale, eps=eps, causal=True)
    y = y * npm
    # encoder-decoder cross attention
    y = _cross_attn_block(y, enc, skpad, c_wq[...], c_bq[...], c_wkv[...],
                          c_bkv[...], c_wo3[...], c_bo[...], c_g[...], c_b[...],
                          n_head=n_head, d_k=d_k, scale=scale, eps=eps)
    y = y * npm
    y = _ffn_block(y, f_w1[...], f_b1[...], f_w2[...], f_b2[...],
                   f_g[...], f_b[...], eps=eps)
    y = y * npm
    out_ref[0] = y.astype(out_ref.dtype)


def proj_kernel(x_ref, w_ref, out_ref):
    # logits block = x (L, D) bf16 @ w_block (D, tv) bf16 -> f32
    out_ref[0] = jnp.dot(x_ref[0].astype(jnp.bfloat16), w_ref[...],
                         preferred_element_type=jnp.float32).astype(out_ref.dtype)


# ----------------------------------------------------------------------------
# Pallas wrappers
# ----------------------------------------------------------------------------
def _w_spec(w):
    # weight stays resident: same (single) block for every grid step
    return pl.BlockSpec(w.shape, lambda *_: (0,) * w.ndim)


def enc_layer_pallas(x, kpad, npm, lp, n_head, d_k, scale):
    B, L, D = x.shape
    a, f = lp["slf"], lp["ffn"]
    a_wo3 = a["wo"].reshape(n_head, d_k, D)      # free metadata reshape
    weights = (a["w_qkv"], a["b_qkv"], a_wo3, a["bo"], a["g"], a["b"],
               f["w1"], f["b1"], f["w2"], f["b2"], f["g"], f["b"])
    kern = functools.partial(enc_layer_kernel, n_head=n_head, d_k=d_k,
                             scale=scale, eps=LAYER_EPS)
    in_specs = ([pl.BlockSpec((1, L, D), lambda b: (b, 0, 0)),
                 pl.BlockSpec((1, 1, L), lambda b: (b, 0, 0)),
                 pl.BlockSpec((1, L, 1), lambda b: (b, 0, 0))]
                + [_w_spec(w) for w in weights])
    return pl.pallas_call(
        kern,
        out_shape=jax.ShapeDtypeStruct((B, L, D), jnp.bfloat16),
        grid=(B,),
        in_specs=in_specs,
        out_specs=pl.BlockSpec((1, L, D), lambda b: (b, 0, 0)),
        compiler_params=pltpu.CompilerParams(
            dimension_semantics=("parallel",),
            vmem_limit_bytes=VMEM_LIMIT_BYTES),
    )(x, kpad, npm, *weights)


def dec_layer_pallas(x, enc_out, tkpad, skpad, npm, lp, n_head, d_k, scale):
    B, Lt, D = x.shape
    Ls = enc_out.shape[1]
    s, c, f = lp["slf"], lp["enc"], lp["ffn"]
    s_wo3 = s["wo"].reshape(n_head, d_k, D)
    c_wo3 = c["wo"].reshape(n_head, d_k, D)
    weights = (s["w_qkv"], s["b_qkv"], s_wo3, s["bo"], s["g"], s["b"],
               c["wq"], c["bq"], c["wkv"], c["bkv"], c_wo3, c["bo"],
               c["g"], c["b"],
               f["w1"], f["b1"], f["w2"], f["b2"], f["g"], f["b"])
    kern = functools.partial(dec_layer_kernel, n_head=n_head, d_k=d_k,
                             scale=scale, eps=LAYER_EPS)
    in_specs = ([pl.BlockSpec((1, Lt, D), lambda b: (b, 0, 0)),
                 pl.BlockSpec((1, Ls, D), lambda b: (b, 0, 0)),
                 pl.BlockSpec((1, 1, Lt), lambda b: (b, 0, 0)),
                 pl.BlockSpec((1, 1, Ls), lambda b: (b, 0, 0)),
                 pl.BlockSpec((1, Lt, 1), lambda b: (b, 0, 0))]
                + [_w_spec(w) for w in weights])
    return pl.pallas_call(
        kern,
        out_shape=jax.ShapeDtypeStruct((B, Lt, D), jnp.bfloat16),
        grid=(B,),
        in_specs=in_specs,
        out_specs=pl.BlockSpec((1, Lt, D), lambda b: (b, 0, 0)),
        compiler_params=pltpu.CompilerParams(
            dimension_semantics=("parallel",),
            vmem_limit_bytes=VMEM_LIMIT_BYTES),
    )(x, enc_out, tkpad, skpad, npm, *weights)


def proj_pallas(x, word_emb, tv=None):
    B, L, D = x.shape
    V = word_emb.shape[0]
    w_t = word_emb.T                     # (D, V), transposed ONCE per forward
    if tv is None:
        tv = V if V <= 2048 else 2048    # lane-dense vocab tiles
    assert V % tv == 0
    # grid = (vocab tiles, batch): the (D, tv) weight block is reused across the
    # inner batch axis, so weight HBM traffic is V*D instead of B*V*D.
    return pl.pallas_call(
        proj_kernel,
        out_shape=jax.ShapeDtypeStruct((B, L, V), jnp.float32),
        grid=(V // tv, B),
        in_specs=[pl.BlockSpec((1, L, D), lambda v, b: (b, 0, 0)),
                  pl.BlockSpec((D, tv), lambda v, b: (0, v))],
        out_specs=pl.BlockSpec((1, L, tv), lambda v, b: (b, 0, v)),
        compiler_params=pltpu.CompilerParams(
            dimension_semantics=("parallel", "parallel"),
            vmem_limit_bytes=VMEM_LIMIT_BYTES),
    )(x, w_t)


# ----------------------------------------------------------------------------
# pure-JAX reference (independent batched math, same cast points) for checking
# ----------------------------------------------------------------------------
def _mha_ref(q_in, kv_in, kpad, p, n_head, d_k, scale, causal, fused):
    B, Lq, _ = q_in.shape
    Lk = kv_in.shape[1]
    hd = n_head * d_k
    q16 = q_in.astype(jnp.bfloat16)
    kv16 = kv_in.astype(jnp.bfloat16)
    if fused:
        qkv = jnp.einsum("bld,df->blf", q16, p["w_qkv"],
                         preferred_element_type=jnp.float32) + p["b_qkv"]
        Q, K, V = qkv[..., :hd], qkv[..., hd:2 * hd], qkv[..., 2 * hd:]
    else:
        Q = jnp.einsum("bld,df->blf", q16, p["wq"],
                       preferred_element_type=jnp.float32) + p["bq"]
        kv = jnp.einsum("bld,df->blf", kv16, p["wkv"],
                        preferred_element_type=jnp.float32) + p["bkv"]
        K, V = kv[..., :hd], kv[..., hd:]
    Q = Q * scale
    Qh = Q.reshape(B, Lq, n_head, d_k).transpose(0, 2, 1, 3).astype(jnp.bfloat16)
    Kh = K.reshape(B, Lk, n_head, d_k).transpose(0, 2, 1, 3).astype(jnp.bfloat16)
    Vh = V.reshape(B, Lk, n_head, d_k).transpose(0, 2, 1, 3).astype(jnp.bfloat16)
    s = jnp.einsum("bhqd,bhkd->bhqk", Qh, Kh, preferred_element_type=jnp.float32)
    mask = jnp.broadcast_to(kpad[:, None] > 0, (B, 1, Lq, Lk))
    if causal:
        tri = jnp.triu(jnp.ones((Lq, Lk), bool), k=1)
        mask = mask | tri[None, None]
    s = jnp.where(mask, MASK_VALUE, s)
    s = s - jnp.max(s, axis=-1, keepdims=True)
    pu = jnp.exp(s)
    denom = jnp.sum(pu, axis=-1, keepdims=True)
    ctx = jnp.einsum("bhqk,bhkd->bhqd", pu.astype(jnp.bfloat16), Vh,
                     preferred_element_type=jnp.float32) * (1.0 / denom)
    cat = ctx.transpose(0, 2, 1, 3).reshape(B, Lq, hd)
    out = jnp.einsum("blh,hd->bld", cat.astype(jnp.bfloat16), p["wo"],
                     preferred_element_type=jnp.float32) + p["bo"]
    return _layer_norm_f32(out + q_in.astype(jnp.float32), p["g"], p["b"],
                           LAYER_EPS)


def _ffn_ref(x, p):
    x16 = x.astype(jnp.bfloat16)
    h = jnp.maximum(jnp.einsum("bld,df->blf", x16, p["w1"],
                               preferred_element_type=jnp.float32) + p["b1"], 0.0)
    o = jnp.einsum("blf,fd->bld", h.astype(jnp.bfloat16), p["w2"],
                   preferred_element_type=jnp.float32) + p["b2"]
    return _layer_norm_f32(o + x.astype(jnp.float32), p["g"], p["b"], LAYER_EPS)


def enc_layer_ref(x, kpad, npm, lp, n_head, d_k, scale):
    y = _mha_ref(x, x, kpad, lp["slf"], n_head, d_k, scale,
                 causal=False, fused=True)
    y = y * npm
    y = _ffn_ref(y, lp["ffn"])
    return (y * npm).astype(jnp.bfloat16)


def dec_layer_ref(x, enc_out, tkpad, skpad, npm, lp, n_head, d_k, scale):
    y = _mha_ref(x, x, tkpad, lp["slf"], n_head, d_k, scale,
                 causal=True, fused=True)
    y = y * npm
    y = _mha_ref(y, enc_out, skpad, lp["enc"], n_head, d_k, scale,
                 causal=False, fused=False)
    y = y * npm
    y = _ffn_ref(y, lp["ffn"])
    return (y * npm).astype(jnp.bfloat16)


def proj_ref(x, word_emb):
    return jnp.einsum("bld,vd->blv", x, word_emb,
                      preferred_element_type=jnp.float32)


# ----------------------------------------------------------------------------
# parameters + full forward (mirrors TransformerDecoder.forward, eval mode)
# ----------------------------------------------------------------------------
def sinusoid_pe(max_len, d_model):
    pe = np.zeros((max_len, d_model), np.float32)
    position = np.arange(max_len, dtype=np.float32)[:, None]
    div_term = np.exp(np.arange(0, d_model, 2, dtype=np.float32)
                      * -(math.log(10000.0) / d_model))
    pe[:, 0::2] = np.sin(position * div_term)
    pe[:, 1::2] = np.cos(position * div_term)
    return jnp.asarray(pe)[None]  # (1, max_len, d_model)


def init_params(key, cfg, n_head, n_layers):
    D = cfg["hidden_size"]
    assert D % n_head == 0
    d_k = D // n_head
    hd = n_head * d_k
    d_inner = 4 * D
    keys = iter(jax.random.split(key, 4096))

    def nrm(shape, std, dtype=jnp.float32):
        return (std * jax.random.normal(next(keys), shape)).astype(dtype)

    bf16 = jnp.bfloat16

    def attn_raw():
        std_qk = math.sqrt(2.0 / (D + d_k))
        std_o = math.sqrt(2.0 / (hd + D))
        return (nrm((D, hd), std_qk, bf16), nrm((1, hd), 0.02),   # wq, bq
                nrm((D, hd), std_qk, bf16), nrm((1, hd), 0.02),   # wk, bk
                nrm((D, hd), std_qk, bf16), nrm((1, hd), 0.02),   # wv, bv
                nrm((hd, D), std_o, bf16), nrm((1, D), 0.02))     # wo, bo

    def mha_self_p():  # fused Q|K|V projection weight built ONCE at init
        wq, bq, wk, bk, wv, bv, wo, bo = attn_raw()
        return dict(w_qkv=jnp.concatenate([wq, wk, wv], axis=1),
                    b_qkv=jnp.concatenate([bq, bk, bv], axis=1),
                    wo=wo, bo=bo,
                    g=jnp.ones((1, D), jnp.float32),
                    b=jnp.zeros((1, D), jnp.float32))

    def mha_cross_p():  # Q separate (queries != keys), fused K|V
        wq, bq, wk, bk, wv, bv, wo, bo = attn_raw()
        return dict(wq=wq, bq=bq,
                    wkv=jnp.concatenate([wk, wv], axis=1),
                    bkv=jnp.concatenate([bk, bv], axis=1),
                    wo=wo, bo=bo,
                    g=jnp.ones((1, D), jnp.float32),
                    b=jnp.zeros((1, D), jnp.float32))

    def ffn_p():
        std1 = math.sqrt(2.0 / (D + d_inner))
        return dict(w1=nrm((D, d_inner), std1, bf16), b1=nrm((1, d_inner), 0.02),
                    w2=nrm((d_inner, D), std1, bf16), b2=nrm((1, D), 0.02),
                    g=jnp.ones((1, D), jnp.float32),
                    b=jnp.zeros((1, D), jnp.float32))

    word_emb = nrm((cfg["vocab_size"], D), 0.02, bf16)
    word_emb = word_emb.at[cfg["pad_token_id"]].set(0.0)  # padding_idx
    return dict(
        word_emb=word_emb,
        ent_emb=nrm((cfg["max_entity_embeddings"], D), 0.02, bf16),
        tri_emb=nrm((cfg["max_triple_embeddings"], D), 0.02, bf16),
        pos_emb=nrm((cfg["max_position_embeddings"], D), 0.02, bf16),
        emb_ln_g=jnp.ones((1, D), jnp.float32),
        emb_ln_b=jnp.zeros((1, D), jnp.float32),
        pe=sinusoid_pe(1024, D),
        enc_layers=[dict(slf=mha_self_p(), ffn=ffn_p()) for _ in range(n_layers)],
        dec_layers=[dict(slf=mha_self_p(), enc=mha_cross_p(), ffn=ffn_p())
                    for _ in range(n_layers)],
    )


def transformer_decoder_forward(params, cfg, n_head,
                                input_ids, entity_ids, triple_ids, position_ids,
                                tgt_seq, enc_layer_fn, dec_layer_fn, proj_fn):
    D = cfg["hidden_size"]
    d_k = D // n_head
    scale = 1.0 / math.sqrt(d_k)
    pad = cfg["pad_token_id"]
    Lt = tgt_seq.shape[1]
    f32 = jnp.float32

    # KnowledgeEmbeddings (NB: reference model looks up positions with triple_ids,
    # not position_ids -- mirrored intentionally)
    emb = (params["word_emb"][input_ids].astype(f32)
           + params["ent_emb"][entity_ids].astype(f32)
           + params["tri_emb"][triple_ids].astype(f32)
           + params["pos_emb"][triple_ids].astype(f32))
    emb = _layer_norm_f32(emb, params["emb_ln_g"], params["emb_ln_b"],
                          cfg["layer_norm_eps"]).astype(jnp.bfloat16)
    # dropout layers are identity in eval mode

    # only O(B*L) masks leave HBM (causal part is generated in-kernel)
    src_kpad = (input_ids == pad).astype(f32)[:, None, :]   # (B,1,Ls)
    npm_src = (input_ids != pad).astype(f32)[..., None]     # (B,Ls,1)

    # ---- encoder stack (one fused pallas_call per layer) ----
    enc = emb
    for lp in params["enc_layers"]:
        enc = enc_layer_fn(enc, src_kpad, npm_src, lp, n_head, d_k, scale)
    enc_output = enc

    # ---- decoder stack (one fused pallas_call per layer) ----
    tgt_kpad = (tgt_seq == pad).astype(f32)[:, None, :]     # (B,1,Lt)
    npm_tgt = (tgt_seq != pad).astype(f32)[..., None]       # (B,Lt,1)
    dec = (params["word_emb"][tgt_seq].astype(f32)
           + params["pe"][:, :Lt]).astype(jnp.bfloat16)
    for lp in params["dec_layers"]:
        dec = dec_layer_fn(dec, enc_output, tgt_kpad, src_kpad, npm_tgt,
                           lp, n_head, d_k, scale)

    # tied output projection (untie_embedding == False): word_emb used as (V, D)
    return proj_fn(dec, params["word_emb"])


# ----------------------------------------------------------------------------
# main
# ----------------------------------------------------------------------------
if __name__ == "__main__":
    cfg = dict(hidden_size=32, vocab_size=64,
               max_entity_embeddings=12, max_triple_embeddings=12,
               max_position_embeddings=64,
               pad_token_id=0, sos_token_id=1, eos_token_id=2,
               layer_norm_eps=1e-12, hidden_dropout_prob=0.1,
               untie_embedding=False)
    n_head, n_layers = 4, 2
    B, Ls, Lt = 2, 8, 6

    key = jax.random.PRNGKey(0)
    kp, k1, k2, k3, k4 = jax.random.split(key, 5)
    params = init_params(kp, cfg, n_head, n_layers)

    input_ids = jax.random.randint(k1, (B, Ls), 3, cfg["vocab_size"])
    input_ids = input_ids.at[:, -2:].set(cfg["pad_token_id"])  # some src padding
    entity_ids = jax.random.randint(k2, (B, Ls), 0, cfg["max_entity_embeddings"])
    triple_ids = jax.random.randint(k3, (B, Ls), 0, cfg["max_triple_embeddings"])
    position_ids = jnp.broadcast_to(jnp.arange(Ls), (B, Ls))
    tgt_seq = jax.random.randint(k4, (B, Lt), 3, cfg["vocab_size"])
    tgt_seq = tgt_seq.at[:, 0].set(cfg["sos_token_id"])
    tgt_seq = tgt_seq.at[:, -1].set(cfg["pad_token_id"])  # tgt padding at the end

    logits_pallas = transformer_decoder_forward(
        params, cfg, n_head, input_ids, entity_ids, triple_ids, position_ids,
        tgt_seq, enc_layer_pallas, dec_layer_pallas, proj_pallas)
    logits_pallas = jax.block_until_ready(logits_pallas)

    # silent correctness check against a pure-JAX reference with matching casts
    logits_ref = transformer_decoder_forward(
        params, cfg, n_head, input_ids, entity_ids, triple_ids, position_ids,
        tgt_seq, enc_layer_ref, dec_layer_ref, proj_ref)
    logits_ref = jax.block_until_ready(logits_ref)

    assert logits_pallas.shape == (B, Lt, cfg["vocab_size"])
    np.testing.assert_allclose(np.asarray(logits_pallas), np.asarray(logits_ref),
                               rtol=1e-2, atol=1e-2)
    assert bool(jnp.all(jnp.isfinite(logits_pallas)))
    print("KERNEL_OK")
</pallas_src>

<mosaic_0001>
module attributes {stable_mosaic.version = 11 : i64} {
  func.func @enc_layer_kernel(%arg0: i32, %arg1: memref<1x8x32xbf16, #tpu.memory_space<vmem>>, %arg2: memref<1x1x8xf32, #tpu.memory_space<vmem>>, %arg3: memref<1x8x1xf32, #tpu.memory_space<vmem>>, %arg4: memref<32x96xbf16, #tpu.memory_space<vmem>>, %arg5: memref<1x96xf32, #tpu.memory_space<vmem>>, %arg6: memref<4x8x32xbf16, #tpu.memory_space<vmem>>, %arg7: memref<1x32xf32, #tpu.memory_space<vmem>>, %arg8: memref<1x32xf32, #tpu.memory_space<vmem>>, %arg9: memref<1x32xf32, #tpu.memory_space<vmem>>, %arg10: memref<32x128xbf16, #tpu.memory_space<vmem>>, %arg11: memref<1x128xf32, #tpu.memory_space<vmem>>, %arg12: memref<128x32xbf16, #tpu.memory_space<vmem>>, %arg13: memref<1x32xf32, #tpu.memory_space<vmem>>, %arg14: memref<1x32xf32, #tpu.memory_space<vmem>>, %arg15: memref<1x32xf32, #tpu.memory_space<vmem>>, %arg16: memref<1x8x32xbf16, #tpu.memory_space<vmem>>) attributes {dimension_semantics = [#tpu.dimension_semantics<parallel>], iteration_bounds = array<i64: 2>, scalar_prefetch = 0 : i64, scratch_operands = 0 : i64, tpu.core_type = #tpu.core_type<tc>, window_params = [{transform_indices = @transform_0, window_bounds = array<i64: 1, 8, 32>}, {transform_indices = @transform_1, window_bounds = array<i64: 1, 1, 8>}, {transform_indices = @transform_2, window_bounds = array<i64: 1, 8, 1>}, {pipeline_mode = #tpu.pipeline_mode<synchronous>, transform_indices = @transform_3, window_bounds = array<i64: 32, 96>}, {pipeline_mode = #tpu.pipeline_mode<synchronous>, transform_indices = @transform_4, window_bounds = array<i64: 1, 96>}, {pipeline_mode = #tpu.pipeline_mode<synchronous>, transform_indices = @transform_5, window_bounds = array<i64: 4, 8, 32>}, {pipeline_mode = #tpu.pipeline_mode<synchronous>, transform_indices = @transform_6, window_bounds = array<i64: 1, 32>}, {pipeline_mode = #tpu.pipeline_mode<synchronous>, transform_indices = @transform_7, window_bounds = array<i64: 1, 32>}, {pipeline_mode = #tpu.pipeline_mode<synchronous>, transform_indices = @transform_8, window_bounds = array<i64: 1, 32>}, {pipeline_mode = #tpu.pipeline_mode<synchronous>, transform_indices = @transform_9, window_bounds = array<i64: 32, 128>}, {pipeline_mode = #tpu.pipeline_mode<synchronous>, transform_indices = @transform_10, window_bounds = array<i64: 1, 128>}, {pipeline_mode = #tpu.pipeline_mode<synchronous>, transform_indices = @transform_11, window_bounds = array<i64: 128, 32>}, {pipeline_mode = #tpu.pipeline_mode<synchronous>, transform_indices = @transform_12, window_bounds = array<i64: 1, 32>}, {pipeline_mode = #tpu.pipeline_mode<synchronous>, transform_indices = @transform_13, window_bounds = array<i64: 1, 32>}, {pipeline_mode = #tpu.pipeline_mode<synchronous>, transform_indices = @transform_14, window_bounds = array<i64: 1, 32>}, {transform_indices = @transform_15, window_bounds = array<i64: 1, 8, 32>}]} {
    %c0 = arith.constant 0 : index
    %c0_0 = arith.constant 0 : index
    %c0_1 = arith.constant 0 : index
    %0 = vector.load %arg1[%c0, %c0_0, %c0_1] : memref<1x8x32xbf16, #tpu.memory_space<vmem>>, vector<1x8x32xbf16>
    %1 = vector.shape_cast %0 : vector<1x8x32xbf16> to vector<8x32xbf16>
    %c0_2 = arith.constant 0 : index
    %c0_3 = arith.constant 0 : index
    %c0_4 = arith.constant 0 : index
    %2 = vector.load %arg2[%c0_2, %c0_3, %c0_4] : memref<1x1x8xf32, #tpu.memory_space<vmem>>, vector<1x1x8xf32>
    %3 = vector.shape_cast %2 : vector<1x1x8xf32> to vector<1x8xf32>
    %c0_5 = arith.constant 0 : index
    %c0_6 = arith.constant 0 : index
    %c0_7 = arith.constant 0 : index
    %4 = vector.load %arg3[%c0_5, %c0_6, %c0_7] : memref<1x8x1xf32, #tpu.memory_space<vmem>>, vector<1x8x1xf32>
    %5 = vector.shape_cast %4 : vector<1x8x1xf32> to vector<8x1xf32>
    %c0_8 = arith.constant 0 : index
    %c0_9 = arith.constant 0 : index
    %6 = vector.load %arg4[%c0_8, %c0_9] : memref<32x96xbf16, #tpu.memory_space<vmem>>, vector<32x96xbf16>
    %c0_10 = arith.constant 0 : index
    %c0_11 = arith.constant 0 : index
    %7 = vector.load %arg5[%c0_10, %c0_11] : memref<1x96xf32, #tpu.memory_space<vmem>>, vector<1x96xf32>
    %c0_12 = arith.constant 0 : index
    %c0_13 = arith.constant 0 : index
    %c0_14 = arith.constant 0 : index
    %8 = vector.load %arg6[%c0_12, %c0_13, %c0_14] : memref<4x8x32xbf16, #tpu.memory_space<vmem>>, vector<4x8x32xbf16>
    %c0_15 = arith.constant 0 : index
    %c0_16 = arith.constant 0 : index
    %9 = vector.load %arg7[%c0_15, %c0_16] : memref<1x32xf32, #tpu.memory_space<vmem>>, vector<1x32xf32>
    %c0_17 = arith.constant 0 : index
    %c0_18 = arith.constant 0 : index
    %10 = vector.load %arg8[%c0_17, %c0_18] : memref<1x32xf32, #tpu.memory_space<vmem>>, vector<1x32xf32>
    %c0_19 = arith.constant 0 : index
    %c0_20 = arith.constant 0 : index
    %11 = vector.load %arg9[%c0_19, %c0_20] : memref<1x32xf32, #tpu.memory_space<vmem>>, vector<1x32xf32>
    %cst = arith.constant dense<0.000000e+00> : vector<8x96xf32>
    %12 = tpu.matmul %1, %6, %cst {dimension_numbers = #tpu.dot_dimension_numbers<[1], [0], [0], [1], [0, 0, 1, 1], [], []>} : vector<8x32xbf16>, vector<32x96xbf16>, vector<8x96xf32> -> vector<8x96xf32>
    %13 = vector.broadcast %7 : vector<1x96xf32> to vector<8x96xf32>
    %14 = arith.addf %12, %13 : vector<8x96xf32>
    %15 = vector.extract_strided_slice %14 {offsets = [0, 0], sizes = [8, 32], strides = [1, 1]} : vector<8x96xf32> to vector<8x32xf32>
    %cst_21 = arith.constant 0.353553385 : f32
    %16 = vector.broadcast %cst_21 : f32 to vector<8x32xf32>
    %17 = arith.mulf %15, %16 : vector<8x32xf32>
    %18 = vector.extract_strided_slice %14 {offsets = [0, 32], sizes = [8, 32], strides = [1, 1]} : vector<8x96xf32> to vector<8x32xf32>
    %19 = vector.extract_strided_slice %14 {offsets = [0, 64], sizes = [8, 32], strides = [1, 1]} : vector<8x96xf32> to vector<8x32xf32>
    %20 = arith.extf %1 : vector<8x32xbf16> to vector<8x32xf32>
    %cst_22 = arith.constant 0.000000e+00 : f32
    %21 = vector.broadcast %cst_22 : f32 to vector<8x32xf32>
    %22 = vector.extract_strided_slice %17 {offsets = [0, 0], sizes = [8, 8], strides = [1, 1]} : vector<8x32xf32> to vector<8x8xf32>
    %23 = vector.extract_strided_slice %18 {offsets = [0, 0], sizes = [8, 8], strides = [1, 1]} : vector<8x32xf32> to vector<8x8xf32>
    %24 = vector.extract_strided_slice %19 {offsets = [0, 0], sizes = [8, 8], strides = [1, 1]} : vector<8x32xf32> to vector<8x8xf32>
    %25 = arith.truncf %22 : vector<8x8xf32> to vector<8x8xbf16>
    %cst_23 = arith.constant -1.000000e+30 : f32
    %26 = vector.broadcast %cst_23 : f32 to vector<8x1xf32>
    %cst_24 = arith.constant 0.000000e+00 : f32
    %27 = vector.broadcast %cst_24 : f32 to vector<8x1xf32>
    %cst_25 = arith.constant 0.000000e+00 : f32
    %28 = vector.broadcast %cst_25 : f32 to vector<8x8xf32>
    %29 = arith.truncf %23 : vector<8x8xf32> to vector<8x8xbf16>
    %30 = arith.truncf %24 : vector<8x8xf32> to vector<8x8xbf16>
    %cst_26 = arith.constant dense<0.000000e+00> : vector<8x8xf32>
    %31 = tpu.matmul %25, %29, %cst_26 {dimension_numbers = #tpu.dot_dimension_numbers<[1], [1], [0], [0], [0, 0, 1, 0], [], []>} : vector<8x8xbf16>, vector<8x8xbf16>, vector<8x8xf32> -> vector<8x8xf32>
    %32 = vector.shape_cast %3 : vector<1x8xf32> to vector<1x8xf32>
    %33 = vector.broadcast %32 : vector<1x8xf32> to vector<8x8xf32>
    %cst_27 = arith.constant 0.000000e+00 : f32
    %34 = vector.broadcast %cst_27 : f32 to vector<8x8xf32>
    %35 = arith.cmpf ogt, %33, %34 : vector<8x8xf32>
    %cst_28 = arith.constant -1.000000e+30 : f32
    %36 = vector.broadcast %cst_28 : f32 to vector<8x8xf32>
    %37 = arith.select %35, %36, %31 : vector<8x8xi1>, vector<8x8xf32>
    %cst_29 = arith.constant dense<0xFF800000> : vector<8xf32>
    %38 = vector.multi_reduction <maximumf>, %37, %cst_29 [1] : vector<8x8xf32> to vector<8xf32>
    %39 = vector.shape_cast %38 : vector<8xf32> to vector<8x1xf32>
    %40 = arith.maximumf %26, %39 : vector<8x1xf32>
    %41 = arith.subf %26, %40 : vector<8x1xf32>
    %42 = math.exp %41 : vector<8x1xf32>
    %43 = vector.broadcast %40 : vector<8x1xf32> to vector<8x8xf32>
    %44 = arith.subf %37, %43 : vector<8x8xf32>
    %45 = math.exp %44 : vector<8x8xf32>
    %46 = arith.mulf %42, %27 : vector<8x1xf32>
    %cst_30 = arith.constant dense<0.000000e+00> : vector<8xf32>
    %47 = vector.multi_reduction <add>, %45, %cst_30 [1] : vector<8x8xf32> to vector<8xf32>
    %48 = vector.shape_cast %47 : vector<8xf32> to vector<8x1xf32>
    %49 = arith.addf %46, %48 : vector<8x1xf32>
    %50 = vector.broadcast %42 : vector<8x1xf32> to vector<8x8xf32>
    %51 = arith.mulf %50, %28 : vector<8x8xf32>
    %52 = arith.truncf %45 : vector<8x8xf32> to vector<8x8xbf16>
    %cst_31 = arith.constant dense<0.000000e+00> : vector<8x8xf32>
    %53 = tpu.matmul %52, %30, %cst_31 {dimension_numbers = #tpu.dot_dimension_numbers<[1], [0], [0], [1], [0, 0, 1, 1], [], []>} : vector<8x8xbf16>, vector<8x8xbf16>, vector<8x8xf32> -> vector<8x8xf32>
    %54 = arith.addf %51, %53 : vector<8x8xf32>
    %cst_32 = arith.constant 1.000000e+00 : f32
    %55 = vector.broadcast %cst_32 : f32 to vector<8x1xf32>
    %56 = arith.divf %55, %49 : vector<8x1xf32>
    %57 = vector.broadcast %56 : vector<8x1xf32> to vector<8x8xf32>
    %58 = arith.mulf %54, %57 : vector<8x8xf32>
    %59 = arith.truncf %58 : vector<8x8xf32> to vector<8x8xbf16>
    %60 = vector.extract_strided_slice %8 {offsets = [0, 0, 0], sizes = [1, 8, 32], strides = [1, 1, 1]} : vector<4x8x32xbf16> to vector<1x8x32xbf16>
    %61 = vector.shape_cast %60 : vector<1x8x32xbf16> to vector<8x32xbf16>
    %cst_33 = arith.constant dense<0.000000e+00> : vector<8x32xf32>
    %62 = tpu.matmul %59, %61, %cst_33 {dimension_numbers = #tpu.dot_dimension_numbers<[1], [0], [0], [1], [0, 0, 1, 1], [], []>} : vector<8x8xbf16>, vector<8x32xbf16>, vector<8x32xf32> -> vector<8x32xf32>
    %63 = arith.addf %21, %62 : vector<8x32xf32>
    %64 = vector.extract_strided_slice %17 {offsets = [0, 8], sizes = [8, 8], strides = [1, 1]} : vector<8x32xf32> to vector<8x8xf32>
    %65 = vector.extract_strided_slice %18 {offsets = [0, 8], sizes = [8, 8], strides = [1, 1]} : vector<8x32xf32> to vector<8x8xf32>
    %66 = vector.extract_strided_slice %19 {offsets = [0, 8], sizes = [8, 8], strides = [1, 1]} : vector<8x32xf32> to vector<8x8xf32>
    %67 = arith.truncf %64 : vector<8x8xf32> to vector<8x8xbf16>
    %cst_34 = arith.constant -1.000000e+30 : f32
    %68 = vector.broadcast %cst_34 : f32 to vector<8x1xf32>
    %cst_35 = arith.constant 0.000000e+00 : f32
    %69 = vector.broadcast %cst_35 : f32 to vector<8x1xf32>
    %cst_36 = arith.constant 0.000000e+00 : f32
    %70 = vector.broadcast %cst_36 : f32 to vector<8x8xf32>
    %71 = arith.truncf %65 : vector<8x8xf32> to vector<8x8xbf16>
    %72 = arith.truncf %66 : vector<8x8xf32> to vector<8x8xbf16>
    %cst_37 = arith.constant dense<0.000000e+00> : vector<8x8xf32>
    %73 = tpu.matmul %67, %71, %cst_37 {dimension_numbers = #tpu.dot_dimension_numbers<[1], [1], [0], [0], [0, 0, 1, 0], [], []>} : vector<8x8xbf16>, vector<8x8xbf16>, vector<8x8xf32> -> vector<8x8xf32>
    %74 = vector.shape_cast %3 : vector<1x8xf32> to vector<1x8xf32>
    %75 = vector.broadcast %74 : vector<1x8xf32> to vector<8x8xf32>
    %cst_38 = arith.constant 0.000000e+00 : f32
    %76 = vector.broadcast %cst_38 : f32 to vector<8x8xf32>
    %77 = arith.cmpf ogt, %75, %76 : vector<8x8xf32>
    %cst_39 = arith.constant -1.000000e+30 : f32
    %78 = vector.broadcast %cst_39 : f32 to vector<8x8xf32>
    %79 = arith.select %77, %78, %73 : vector<8x8xi1>, vector<8x8xf32>
    %cst_40 = arith.constant dense<0xFF800000> : vector<8xf32>
    %80 = vector.multi_reduction <maximumf>, %79, %cst_40 [1] : vector<8x8xf32> to vector<8xf32>
    %81 = vector.shape_cast %80 : vector<8xf32> to vector<8x1xf32>
    %82 = arith.maximumf %68, %81 : vector<8x1xf32>
    %83 = arith.subf %68, %82 : vector<8x1xf32>
    %84 = math.exp %83 : vector<8x1xf32>
    %85 = vector.broadcast %82 : vector<8x1xf32> to vector<8x8xf32>
    %86 = arith.subf %79, %85 : vector<8x8xf32>
    %87 = math.exp %86 : vector<8x8xf32>
    %88 = arith.mulf %84, %69 : vector<8x1xf32>
    %cst_41 = arith.constant dense<0.000000e+00> : vector<8xf32>
    %89 = vector.multi_reduction <add>, %87, %cst_41 [1] : vector<8x8xf32> to vector<8xf32>
    %90 = vector.shape_cast %89 : vector<8xf32> to vector<8x1xf32>
    %91 = arith.addf %88, %90 : vector<8x1xf32>
    %92 = vector.broadcast %84 : vector<8x1xf32> to vector<8x8xf32>
    %93 = arith.mulf %92, %70 : vector<8x8xf32>
    %94 = arith.truncf %87 : vector<8x8xf32> to vector<8x8xbf16>
    %cst_42 = arith.constant dense<0.000000e+00> : vector<8x8xf32>
    %95 = tpu.matmul %94, %72, %cst_42 {dimension_numbers = #tpu.dot_dimension_numbers<[1], [0], [0], [1], [0, 0, 1, 1], [], []>} : vector<8x8xbf16>, vector<8x8xbf16>, vector<8x8xf32> -> vector<8x8xf32>
    %96 = arith.addf %93, %95 : vector<8x8xf32>
    %cst_43 = arith.constant 1.000000e+00 : f32
    %97 = vector.broadcast %cst_43 : f32 to vector<8x1xf32>
    %98 = arith.divf %97, %91 : vector<8x1xf32>
    %99 = vector.broadcast %98 : vector<8x1xf32> to vector<8x8xf32>
    %100 = arith.mulf %96, %99 : vector<8x8xf32>
    %101 = arith.truncf %100 : vector<8x8xf32> to vector<8x8xbf16>
    %102 = vector.extract_strided_slice %8 {offsets = [1, 0, 0], sizes = [1, 8, 32], strides = [1, 1, 1]} : vector<4x8x32xbf16> to vector<1x8x32xbf16>
    %103 = vector.shape_cast %102 : vector<1x8x32xbf16> to vector<8x32xbf16>
    %cst_44 = arith.constant dense<0.000000e+00> : vector<8x32xf32>
    %104 = tpu.matmul %101, %103, %cst_44 {dimension_numbers = #tpu.dot_dimension_numbers<[1], [0], [0], [1], [0, 0, 1, 1], [], []>} : vector<8x8xbf16>, vector<8x32xbf16>, vector<8x32xf32> -> vector<8x32xf32>
    %105 = arith.addf %63, %104 : vector<8x32xf32>
    %106 = vector.extract_strided_slice %17 {offsets = [0, 16], sizes = [8, 8], strides = [1, 1]} : vector<8x32xf32> to vector<8x8xf32>
    %107 = vector.extract_strided_slice %18 {offsets = [0, 16], sizes = [8, 8], strides = [1, 1]} : vector<8x32xf32> to vector<8x8xf32>
    %108 = vector.extract_strided_slice %19 {offsets = [0, 16], sizes = [8, 8], strides = [1, 1]} : vector<8x32xf32> to vector<8x8xf32>
    %109 = arith.truncf %106 : vector<8x8xf32> to vector<8x8xbf16>
    %cst_45 = arith.constant -1.000000e+30 : f32
    %110 = vector.broadcast %cst_45 : f32 to vector<8x1xf32>
    %cst_46 = arith.constant 0.000000e+00 : f32
    %111 = vector.broadcast %cst_46 : f32 to vector<8x1xf32>
    %cst_47 = arith.constant 0.000000e+00 : f32
    %112 = vector.broadcast %cst_47 : f32 to vector<8x8xf32>
    %113 = arith.truncf %107 : vector<8x8xf32> to vector<8x8xbf16>
    %114 = arith.truncf %108 : vector<8x8xf32> to vector<8x8xbf16>
    %cst_48 = arith.constant dense<0.000000e+00> : vector<8x8xf32>
    %115 = tpu.matmul %109, %113, %cst_48 {dimension_numbers = #tpu.dot_dimension_numbers<[1], [1], [0], [0], [0, 0, 1, 0], [], []>} : vector<8x8xbf16>, vector<8x8xbf16>, vector<8x8xf32> -> vector<8x8xf32>
    %116 = vector.shape_cast %3 : vector<1x8xf32> to vector<1x8xf32>
    %117 = vector.broadcast %116 : vector<1x8xf32> to vector<8x8xf32>
    %cst_49 = arith.constant 0.000000e+00 : f32
    %118 = vector.broadcast %cst_49 : f32 to vector<8x8xf32>
    %119 = arith.cmpf ogt, %117, %118 : vector<8x8xf32>
    %cst_50 = arith.constant -1.000000e+30 : f32
    %120 = vector.broadcast %cst_50 : f32 to vector<8x8xf32>
    %121 = arith.select %119, %120, %115 : vector<8x8xi1>, vector<8x8xf32>
    %cst_51 = arith.constant dense<0xFF800000> : vector<8xf32>
    %122 = vector.multi_reduction <maximumf>, %121, %cst_51 [1] : vector<8x8xf32> to vector<8xf32>
    %123 = vector.shape_cast %122 : vector<8xf32> to vector<8x1xf32>
    %124 = arith.maximumf %110, %123 : vector<8x1xf32>
    %125 = arith.subf %110, %124 : vector<8x1xf32>
    %126 = math.exp %125 : vector<8x1xf32>
    %127 = vector.broadcast %124 : vector<8x1xf32> to vector<8x8xf32>
    %128 = arith.subf %121, %127 : vector<8x8xf32>
    %129 = math.exp %128 : vector<8x8xf32>
    %130 = arith.mulf %126, %111 : vector<8x1xf32>
    %cst_52 = arith.constant dense<0.000000e+00> : vector<8xf32>
    %131 = vector.multi_reduction <add>, %129, %cst_52 [1] : vector<8x8xf32> to vector<8xf32>
    %132 = vector.shape_cast %131 : vector<8xf32> to vector<8x1xf32>
    %133 = arith.addf %130, %132 : vector<8x1xf32>
    %134 = vector.broadcast %126 : vector<8x1xf32> to vector<8x8xf32>
    %135 = arith.mulf %134, %112 : vector<8x8xf32>
    %136 = arith.truncf %129 : vector<8x8xf32> to vector<8x8xbf16>
    %cst_53 = arith.constant dense<0.000000e+00> : vector<8x8xf32>
    %137 = tpu.matmul %136, %114, %cst_53 {dimension_numbers = #tpu.dot_dimension_numbers<[1], [0], [0], [1], [0, 0, 1, 1], [], []>} : vector<8x8xbf16>, vector<8x8xbf16>, vector<8x8xf32> -> vector<8x8xf32>
    %138 = arith.addf %135, %137 : vector<8x8xf32>
    %cst_54 = arith.constant 1.000000e+00 : f32
    %139 = vector.broadcast %cst_54 : f32 to vector<8x1xf32>
    %140 = arith.divf %139, %133 : vector<8x1xf32>
    %141 = vector.broadcast %140 : vector<8x1xf32> to vector<8x8xf32>
    %142 = arith.mulf %138, %141 : vector<8x8xf32>
    %143 = arith.truncf %142 : vector<8x8xf32> to vector<8x8xbf16>
    %144 = vector.extract_strided_slice %8 {offsets = [2, 0, 0], sizes = [1, 8, 32], strides = [1, 1, 1]} : vector<4x8x32xbf16> to vector<1x8x32xbf16>
    %145 = vector.shape_cast %144 : vector<1x8x32xbf16> to vector<8x32xbf16>
    %cst_55 = arith.constant dense<0.000000e+00> : vector<8x32xf32>
    %146 = tpu.matmul %143, %145, %cst_55 {dimension_numbers = #tpu.dot_dimension_numbers<[1], [0], [0], [1], [0, 0, 1, 1], [], []>} : vector<8x8xbf16>, vector<8x32xbf16>, vector<8x32xf32> -> vector<8x32xf32>
    %147 = arith.addf %105, %146 : vector<8x32xf32>
    %148 = vector.extract_strided_slice %17 {offsets = [0, 24], sizes = [8, 8], strides = [1, 1]} : vector<8x32xf32> to vector<8x8xf32>
    %149 = vector.extract_strided_slice %18 {offsets = [0, 24], sizes = [8, 8], strides = [1, 1]} : vector<8x32xf32> to vector<8x8xf32>
    %150 = vector.extract_strided_slice %19 {offsets = [0, 24], sizes = [8, 8], strides = [1, 1]} : vector<8x32xf32> to vector<8x8xf32>
    %151 = arith.truncf %148 : vector<8x8xf32> to vector<8x8xbf16>
    %cst_56 = arith.constant -1.000000e+30 : f32
    %152 = vector.broadcast %cst_56 : f32 to vector<8x1xf32>
    %cst_57 = arith.constant 0.000000e+00 : f32
    %153 = vector.broadcast %cst_57 : f32 to vector<8x1xf32>
    %cst_58 = arith.constant 0.000000e+00 : f32
    %154 = vector.broadcast %cst_58 : f32 to vector<8x8xf32>
    %155 = arith.truncf %149 : vector<8x8xf32> to vector<8x8xbf16>
    %156 = arith.truncf %150 : vector<8x8xf32> to vector<8x8xbf16>
    %cst_59 = arith.constant dense<0.000000e+00> : vector<8x8xf32>
    %157 = tpu.matmul %151, %155, %cst_59 {dimension_numbers = #tpu.dot_dimension_numbers<[1], [1], [0], [0], [0, 0, 1, 0], [], []>} : vector<8x8xbf16>, vector<8x8xbf16>, vector<8x8xf32> -> vector<8x8xf32>
    %158 = vector.shape_cast %3 : vector<1x8xf32> to vector<1x8xf32>
    %159 = vector.broadcast %158 : vector<1x8xf32> to vector<8x8xf32>
    %cst_60 = arith.constant 0.000000e+00 : f32
    %160 = vector.broadcast %cst_60 : f32 to vector<8x8xf32>
    %161 = arith.cmpf ogt, %159, %160 : vector<8x8xf32>
    %cst_61 = arith.constant -1.000000e+30 : f32
    %162 = vector.broadcast %cst_61 : f32 to vector<8x8xf32>
    %163 = arith.select %161, %162, %157 : vector<8x8xi1>, vector<8x8xf32>
    %cst_62 = arith.constant dense<0xFF800000> : vector<8xf32>
    %164 = vector.multi_reduction <maximumf>, %163, %cst_62 [1] : vector<8x8xf32> to vector<8xf32>
    %165 = vector.shape_cast %164 : vector<8xf32> to vector<8x1xf32>
    %166 = arith.maximumf %152, %165 : vector<8x1xf32>
    %167 = arith.subf %152, %166 : vector<8x1xf32>
    %168 = math.exp %167 : vector<8x1xf32>
    %169 = vector.broadcast %166 : vector<8x1xf32> to vector<8x8xf32>
    %170 = arith.subf %163, %169 : vector<8x8xf32>
    %171 = math.exp %170 : vector<8x8xf32>
    %172 = arith.mulf %168, %153 : vector<8x1xf32>
    %cst_63 = arith.constant dense<0.000000e+00> : vector<8xf32>
    %173 = vector.multi_reduction <add>, %171, %cst_63 [1] : vector<8x8xf32> to vector<8xf32>
    %174 = vector.shape_cast %173 : vector<8xf32> to vector<8x1xf32>
    %175 = arith.addf %172, %174 : vector<8x1xf32>
    %176 = vector.broadcast %168 : vector<8x1xf32> to vector<8x8xf32>
    %177 = arith.mulf %176, %154 : vector<8x8xf32>
    %178 = arith.truncf %171 : vector<8x8xf32> to vector<8x8xbf16>
    %cst_64 = arith.constant dense<0.000000e+00> : vector<8x8xf32>
    %179 = tpu.matmul %178, %156, %cst_64 {dimension_numbers = #tpu.dot_dimension_numbers<[1], [0], [0], [1], [0, 0, 1, 1], [], []>} : vector<8x8xbf16>, vector<8x8xbf16>, vector<8x8xf32> -> vector<8x8xf32>
    %180 = arith.addf %177, %179 : vector<8x8xf32>
    %cst_65 = arith.constant 1.000000e+00 : f32
    %181 = vector.broadcast %cst_65 : f32 to vector<8x1xf32>
    %182 = arith.divf %181, %175 : vector<8x1xf32>
    %183 = vector.broadcast %182 : vector<8x1xf32> to vector<8x8xf32>
    %184 = arith.mulf %180, %183 : vector<8x8xf32>
    %185 = arith.truncf %184 : vector<8x8xf32> to vector<8x8xbf16>
    %186 = vector.extract_strided_slice %8 {offsets = [3, 0, 0], sizes = [1, 8, 32], strides = [1, 1, 1]} : vector<4x8x32xbf16> to vector<1x8x32xbf16>
    %187 = vector.shape_cast %186 : vector<1x8x32xbf16> to vector<8x32xbf16>
    %cst_66 = arith.constant dense<0.000000e+00> : vector<8x32xf32>
    %188 = tpu.matmul %185, %187, %cst_66 {dimension_numbers = #tpu.dot_dimension_numbers<[1], [0], [0], [1], [0, 0, 1, 1], [], []>} : vector<8x8xbf16>, vector<8x32xbf16>, vector<8x32xf32> -> vector<8x32xf32>
    %189 = arith.addf %147, %188 : vector<8x32xf32>
    %190 = vector.broadcast %9 : vector<1x32xf32> to vector<8x32xf32>
    %191 = arith.addf %189, %190 : vector<8x32xf32>
    %192 = arith.addf %191, %20 : vector<8x32xf32>
    %cst_67 = arith.constant dense<0.000000e+00> : vector<8xf32>
    %193 = vector.multi_reduction <add>, %192, %cst_67 [1] : vector<8x32xf32> to vector<8xf32>
    %194 = vector.shape_cast %193 : vector<8xf32> to vector<8x1xf32>
    %cst_68 = arith.constant 3.200000e+01 : f32
    %195 = vector.broadcast %cst_68 : f32 to vector<8x1xf32>
    %196 = arith.divf %194, %195 : vector<8x1xf32>
    %197 = vector.broadcast %196 : vector<8x1xf32> to vector<8x32xf32>
    %198 = arith.subf %192, %197 : vector<8x32xf32>
    %199 = arith.mulf %198, %198 : vector<8x32xf32>
    %cst_69 = arith.constant dense<0.000000e+00> : vector<8xf32>
    %200 = vector.multi_reduction <add>, %199, %cst_69 [1] : vector<8x32xf32> to vector<8xf32>
    %201 = vector.shape_cast %200 : vector<8xf32> to vector<8x1xf32>
    %cst_70 = arith.constant 3.200000e+01 : f32
    %202 = vector.broadcast %cst_70 : f32 to vector<8x1xf32>
    %203 = arith.divf %201, %202 : vector<8x1xf32>
    %204 = vector.broadcast %196 : vector<8x1xf32> to vector<8x32xf32>
    %205 = arith.subf %192, %204 : vector<8x32xf32>
    %cst_71 = arith.constant 9.99999974E-6 : f32
    %206 = vector.broadcast %cst_71 : f32 to vector<8x1xf32>
    %207 = arith.addf %203, %206 : vector<8x1xf32>
    %208 = math.rsqrt %207 : vector<8x1xf32>
    %209 = vector.broadcast %208 : vector<8x1xf32> to vector<8x32xf32>
    %210 = arith.mulf %205, %209 : vector<8x32xf32>
    %211 = vector.broadcast %10 : vector<1x32xf32> to vector<8x32xf32>
    %212 = arith.mulf %210, %211 : vector<8x32xf32>
    %213 = vector.broadcast %11 : vector<1x32xf32> to vector<8x32xf32>
    %214 = arith.addf %212, %213 : vector<8x32xf32>
    %215 = vector.broadcast %5 : vector<8x1xf32> to vector<8x32xf32>
    %216 = arith.mulf %214, %215 : vector<8x32xf32>
    %c0_72 = arith.constant 0 : index
    %c0_73 = arith.constant 0 : index
    %217 = vector.load %arg10[%c0_72, %c0_73] : memref<32x128xbf16, #tpu.memory_space<vmem>>, vector<32x128xbf16>
    %c0_74 = arith.constant 0 : index
    %c0_75 = arith.constant 0 : index
    %218 = vector.load %arg11[%c0_74, %c0_75] : memref<1x128xf32, #tpu.memory_space<vmem>>, vector<1x128xf32>
    %c0_76 = arith.constant 0 : index
    %c0_77 = arith.constant 0 : index
    %219 = vector.load %arg12[%c0_76, %c0_77] : memref<128x32xbf16, #tpu.memory_space<vmem>>, vector<128x32xbf16>
    %c0_78 = arith.constant 0 : index
    %c0_79 = arith.constant 0 : index
    %220 = vector.load %arg13[%c0_78, %c0_79] : memref<1x32xf32, #tpu.memory_space<vmem>>, vector<1x32xf32>
    %c0_80 = arith.constant 0 : index
    %c0_81 = arith.constant 0 : index
    %221 = vector.load %arg14[%c0_80, %c0_81] : memref<1x32xf32, #tpu.memory_space<vmem>>, vector<1x32xf32>
    %c0_82 = arith.constant 0 : index
    %c0_83 = arith.constant 0 : index
    %222 = vector.load %arg15[%c0_82, %c0_83] : memref<1x32xf32, #tpu.memory_space<vmem>>, vector<1x32xf32>
    %223 = arith.truncf %216 : vector<8x32xf32> to vector<8x32xbf16>
    %cst_84 = arith.constant dense<0.000000e+00> : vector<8x128xf32>
    %224 = tpu.matmul %223, %217, %cst_84 {dimension_numbers = #tpu.dot_dimension_numbers<[1], [0], [0], [1], [0, 0, 1, 1], [], []>} : vector<8x32xbf16>, vector<32x128xbf16>, vector<8x128xf32> -> vector<8x128xf32>
    %225 = vector.broadcast %218 : vector<1x128xf32> to vector<8x128xf32>
    %226 = arith.addf %224, %225 : vector<8x128xf32>
    %cst_85 = arith.constant 0.000000e+00 : f32
    %227 = vector.broadcast %cst_85 : f32 to vector<8x128xf32>
    %228 = arith.maximumf %226, %227 : vector<8x128xf32>
    %229 = arith.truncf %228 : vector<8x128xf32> to vector<8x128xbf16>
    %cst_86 = arith.constant dense<0.000000e+00> : vector<8x32xf32>
    %230 = tpu.matmul %229, %219, %cst_86 {dimension_numbers = #tpu.dot_dimension_numbers<[1], [0], [0], [1], [0, 0, 1, 1], [], []>} : vector<8x128xbf16>, vector<128x32xbf16>, vector<8x32xf32> -> vector<8x32xf32>
    %231 = vector.broadcast %220 : vector<1x32xf32> to vector<8x32xf32>
    %232 = arith.addf %230, %231 : vector<8x32xf32>
    %233 = arith.addf %232, %216 : vector<8x32xf32>
    %cst_87 = arith.constant dense<0.000000e+00> : vector<8xf32>
    %234 = vector.multi_reduction <add>, %233, %cst_87 [1] : vector<8x32xf32> to vector<8xf32>
    %235 = vector.shape_cast %234 : vector<8xf32> to vector<8x1xf32>
    %cst_88 = arith.constant 3.200000e+01 : f32
    %236 = vector.broadcast %cst_88 : f32 to vector<8x1xf32>
    %237 = arith.divf %235, %236 : vector<8x1xf32>
    %238 = vector.broadcast %237 : vector<8x1xf32> to vector<8x32xf32>
    %239 = arith.subf %233, %238 : vector<8x32xf32>
    %240 = arith.mulf %239, %239 : vector<8x32xf32>
    %cst_89 = arith.constant dense<0.000000e+00> : vector<8xf32>
    %241 = vector.multi_reduction <add>, %240, %cst_89 [1] : vector<8x32xf32> to vector<8xf32>
    %242 = vector.shape_cast %241 : vector<8xf32> to vector<8x1xf32>
    %cst_90 = arith.constant 3.200000e+01 : f32
    %243 = vector.broadcast %cst_90 : f32 to vector<8x1xf32>
    %244 = arith.divf %242, %243 : vector<8x1xf32>
    %245 = vector.broadcast %237 : vector<8x1xf32> to vector<8x32xf32>
    %246 = arith.subf %233, %245 : vector<8x32xf32>
    %cst_91 = arith.constant 9.99999974E-6 : f32
    %247 = vector.broadcast %cst_91 : f32 to vector<8x1xf32>
    %248 = arith.addf %244, %247 : vector<8x1xf32>
    %249 = math.rsqrt %248 : vector<8x1xf32>
    %250 = vector.broadcast %249 : vector<8x1xf32> to vector<8x32xf32>
    %251 = arith.mulf %246, %250 : vector<8x32xf32>
    %252 = vector.broadcast %221 : vector<1x32xf32> to vector<8x32xf32>
    %253 = arith.mulf %251, %252 : vector<8x32xf32>
    %254 = vector.broadcast %222 : vector<1x32xf32> to vector<8x32xf32>
    %255 = arith.addf %253, %254 : vector<8x32xf32>
    %256 = vector.broadcast %5 : vector<8x1xf32> to vector<8x32xf32>
    %257 = arith.mulf %255, %256 : vector<8x32xf32>
    %258 = arith.truncf %257 : vector<8x32xf32> to vector<8x32xbf16>
    %c0_92 = arith.constant 0 : index
    %c0_93 = arith.constant 0 : index
    %c0_94 = arith.constant 0 : index
    %259 = vector.load %arg16[%c0_92, %c0_93, %c0_94] : memref<1x8x32xbf16, #tpu.memory_space<vmem>>, vector<1x8x32xbf16>
    %260 = vector.shape_cast %259 : vector<1x8x32xbf16> to vector<8x32xbf16>
    %261 = vector.shape_cast %258 : vector<8x32xbf16> to vector<1x8x32xbf16>
    tpu.vector_store %arg16[%c0_92, %c0_93, %c0_94], %261 {strides = array<i32>} : memref<1x8x32xbf16, #tpu.memory_space<vmem>>, vector<1x8x32xbf16>,
    return
  }
  func.func @transform_0(%arg0: i32) -> (i32, i32, i32) {
    %c0_i32 = arith.constant 0 : i32
    %c0_i32_0 = arith.constant 0 : i32
    %c0_i32_1 = arith.constant 0 : i32
    return %arg0, %c0_i32, %c0_i32_0 : i32, i32, i32
  }
  func.func @transform_1(%arg0: i32) -> (i32, i32, i32) {
    %c0_i32 = arith.constant 0 : i32
    %c0_i32_0 = arith.constant 0 : i32
    %c0_i32_1 = arith.constant 0 : i32
    return %arg0, %c0_i32, %c0_i32_0 : i32, i32, i32
  }
  func.func @transform_2(%arg0: i32) -> (i32, i32, i32) {
    %c0_i32 = arith.constant 0 : i32
    %c0_i32_0 = arith.constant 0 : i32
    %c0_i32_1 = arith.constant 0 : i32
    return %arg0, %c0_i32, %c0_i32_0 : i32, i32, i32
  }
  func.func @transform_3(%arg0: i32) -> (i32, i32) {
    %c0_i32 = arith.constant 0 : i32
    %c0_i32_0 = arith.constant 0 : i32
    %c0_i32_1 = arith.constant 0 : i32
    return %c0_i32, %c0_i32_0 : i32, i32
  }
  func.func @transform_4(%arg0: i32) -> (i32, i32) {
    %c0_i32 = arith.constant 0 : i32
    %c0_i32_0 = arith.constant 0 : i32
    %c0_i32_1 = arith.constant 0 : i32
    return %c0_i32, %c0_i32_0 : i32, i32
  }
  func.func @transform_5(%arg0: i32) -> (i32, i32, i32) {
    %c0_i32 = arith.constant 0 : i32
    %c0_i32_0 = arith.constant 0 : i32
    %c0_i32_1 = arith.constant 0 : i32
    %c0_i32_2 = arith.constant 0 : i32
    return %c0_i32, %c0_i32_0, %c0_i32_1 : i32, i32, i32
  }
  func.func @transform_6(%arg0: i32) -> (i32, i32) {
    %c0_i32 = arith.constant 0 : i32
    %c0_i32_0 = arith.constant 0 : i32
    %c0_i32_1 = arith.constant 0 : i32
    return %c0_i32, %c0_i32_0 : i32, i32
  }
  func.func @transform_7(%arg0: i32) -> (i32, i32) {
    %c0_i32 = arith.constant 0 : i32
    %c0_i32_0 = arith.constant 0 : i32
    %c0_i32_1 = arith.constant 0 : i32
    return %c0_i32, %c0_i32_0 : i32, i32
  }
  func.func @transform_8(%arg0: i32) -> (i32, i32) {
    %c0_i32 = arith.constant 0 : i32
    %c0_i32_0 = arith.constant 0 : i32
    %c0_i32_1 = arith.constant 0 : i32
    return %c0_i32, %c0_i32_0 : i32, i32
  }
  func.func @transform_9(%arg0: i32) -> (i32, i32) {
    %c0_i32 = arith.constant 0 : i32
    %c0_i32_0 = arith.constant 0 : i32
    %c0_i32_1 = arith.constant 0 : i32
    return %c0_i32, %c0_i32_0 : i32, i32
  }
  func.func @transform_10(%arg0: i32) -> (i32, i32) {
    %c0_i32 = arith.constant 0 : i32
    %c0_i32_0 = arith.constant 0 : i32
    %c0_i32_1 = arith.constant 0 : i32
    return %c0_i32, %c0_i32_0 : i32, i32
  }
  func.func @transform_11(%arg0: i32) -> (i32, i32) {
    %c0_i32 = arith.constant 0 : i32
    %c0_i32_0 = arith.constant 0 : i32
    %c0_i32_1 = arith.constant 0 : i32
    return %c0_i32, %c0_i32_0 : i32, i32
  }
  func.func @transform_12(%arg0: i32) -> (i32, i32) {
    %c0_i32 = arith.constant 0 : i32
    %c0_i32_0 = arith.constant 0 : i32
    %c0_i32_1 = arith.constant 0 : i32
    return %c0_i32, %c0_i32_0 : i32, i32
  }
  func.func @transform_13(%arg0: i32) -> (i32, i32) {
    %c0_i32 = arith.constant 0 : i32
    %c0_i32_0 = arith.constant 0 : i32
    %c0_i32_1 = arith.constant 0 : i32
    return %c0_i32, %c0_i32_0 : i32, i32
  }
  func.func @transform_14(%arg0: i32) -> (i32, i32) {
    %c0_i32 = arith.constant 0 : i32
    %c0_i32_0 = arith.constant 0 : i32
    %c0_i32_1 = arith.constant 0 : i32
    return %c0_i32, %c0_i32_0 : i32, i32
  }
  func.func @transform_15(%arg0: i32) -> (i32, i32, i32) {
    %c0_i32 = arith.constant 0 : i32
    %c0_i32_0 = arith.constant 0 : i32
    %c0_i32_1 = arith.constant 0 : i32
    return %arg0, %c0_i32, %c0_i32_0 : i32, i32, i32
  }
}

</mosaic_0001>

<llo_original>
// kernel: tpu_custom_call.1
$region0: #{tpu_custom_call.1}
  #allocation0 [shape = 'u32[]', space=smem, size = 0x4, offset = 0x4, fixed_abs, tag = 'smem constant byte address 0x4 - core index']
  #allocation1 [shape = 'u32[144,128]{1,0:T(1,128)}', space=vmem, size = 0x12000, scoped, tag = 'internal scratch']
  %s0 = inlined_call_operand.vmem [shape: bf16[2,8,32], index: 0, kind: input, shape index: {}]
  %s1 = inlined_call_operand.vmem [shape: f32[2,1,8], index: 1, kind: input, shape index: {}]
  %s2 = inlined_call_operand.vmem [shape: f32[2,8,1], index: 2, kind: input, shape index: {}]
  %s3 = inlined_call_operand.vmem [shape: bf16[32,96], index: 3, kind: input, shape index: {}]
  %s4 = inlined_call_operand.vmem [shape: f32[1,96], index: 4, kind: input, shape index: {}]
  %s5 = inlined_call_operand.vmem [shape: bf16[4,8,32], index: 5, kind: input, shape index: {}]
  %s6 = inlined_call_operand.vmem [shape: f32[1,32], index: 6, kind: input, shape index: {}]
  %s7 = inlined_call_operand.vmem [shape: f32[1,32], index: 7, kind: input, shape index: {}]
  %s8 = inlined_call_operand.vmem [shape: f32[1,32], index: 8, kind: input, shape index: {}]
  %s9 = inlined_call_operand.vmem [shape: bf16[32,128], index: 9, kind: input, shape index: {}]
  %s10 = inlined_call_operand.vmem [shape: f32[1,128], index: 10, kind: input, shape index: {}]
  %s11 = inlined_call_operand.vmem [shape: bf16[128,32], index: 11, kind: input, shape index: {}]
  %s12 = inlined_call_operand.vmem [shape: f32[1,32], index: 12, kind: input, shape index: {}]
  %s13 = inlined_call_operand.vmem [shape: f32[1,32], index: 13, kind: input, shape index: {}]
  %s14 = inlined_call_operand.vmem [shape: f32[1,32], index: 14, kind: input, shape index: {}]
  %s15 = inlined_call_operand.hbm [shape: bf16[2,8,32], index: 15, kind: output, shape index: {}]
  %s16 = sld [smem:[#allocation0]]
  $region93: #{tpu_custom_call.1} parent=0
    _
  %s18 = ssub.s32 1, %s16
  %s19 = scalar_select 0, %s18, %s16
  $region1: #{tpu_custom_call.1} parent=0
    #allocation2 [shape = 'u8[4096]{0}', space=vmem, size = 0x1000, scoped, tag = 'output window, operand 0']
    #allocation3 [shape = 's32[2]{0}', space=sflag, size = 0x8, scoped, tag = 'scoped memory for tpu_custom_call.1']
    %20 = vsyncpa [#allocation3], 0
    %s21 = scalar_lea.sflag [#allocation3], 1
    %22 = vsyncpa %s21, 0
    loop: start=0, step=1, limit=4
    $region2: #{tpu_custom_call.1} parent=1 // loop_pre_header
      _
    $region3: #{tpu_custom_call.1} parent=1 // loop_header
      %s24 = sphi 0, %s28
      %p25 = scmp.ge.s32.totalorder %s24, 4
      %s34 = sphi 0, %s36
      %s37 = sphi 0, %s34
      %s38 = sphi 0, %s37
      %s54 = sphi 0, %s38
      %s60 = sphi 0, %s62
      %s63 = sphi 0, %s60
      %s64 = sphi 0, %s63
      %s80 = sphi 0, %s64
      %s86 = sphi 0, %s88
      %s89 = sphi 0, %s86
      %s90 = sphi 0, %s89
      %s106 = sphi 0, %s90
      %s110 = sphi 0, %s110
      %s112 = sphi 0, %s110
      %s113 = sphi 0, %s112
      %s127 = sphi 0, %s113
      %s131 = sphi 0, %s131
      %s133 = sphi 0, %s131
      %s134 = sphi 0, %s133
      %s148 = sphi 0, %s134
      %s152 = sphi 0, %s152
      %s154 = sphi 0, %s152
      %s155 = sphi 0, %s154
      %s169 = sphi 0, %s155
      %s173 = sphi 0, %s173
      %s175 = sphi 0, %s173
      %s176 = sphi 0, %s175
      %s190 = sphi 0, %s176
      %s194 = sphi 0, %s194
      %s196 = sphi 0, %s194
      %s197 = sphi 0, %s196
      %s211 = sphi 0, %s197
      %s215 = sphi 0, %s215
      %s217 = sphi 0, %s215
      %s218 = sphi 0, %s217
      %s232 = sphi 0, %s218
      %s236 = sphi 0, %s236
      %s238 = sphi 0, %s236
      %s239 = sphi 0, %s238
      %s253 = sphi 0, %s239
      %s257 = sphi 0, %s257
      %s259 = sphi 0, %s257
      %s260 = sphi 0, %s259
      %s274 = sphi 0, %s260
      %s278 = sphi 0, %s278
      %s280 = sphi 0, %s278
      %s281 = sphi 0, %s280
      %s295 = sphi 0, %s281
      %s299 = sphi 0, %s299
      %s301 = sphi 0, %s299
      %s302 = sphi 0, %s301
      %s316 = sphi 0, %s302
      %s320 = sphi 0, %s320
      %s322 = sphi 0, %s320
      %s323 = sphi 0, %s322
      %s337 = sphi 0, %s323
      %s341 = sphi 0, %s341
      %s343 = sphi 0, %s341
      %s344 = sphi 0, %s343
      %s358 = sphi 0, %s344
      %s364 = sphi 0, %s366
      %s367 = sphi 0, %s364
      %s368 = sphi 0, %s367
      %s384 = sphi 0, %s368
    $region4: #{tpu_custom_call.1} parent=1 // loop_header_branch
      %27 = sbr.rel (%p25) target = $region8
    $region5: #{tpu_custom_call.1} parent=1 // loop_body
      %s29 = ssub.s32 %s24, 1
      %s30 = ssub.s32 %s24, 2
      %s31 = sadd.s32 %s24, 1
      %s32 = ssub.s32 %s24, %s31
      %p33 = scmp.eq.s32.totalorder %s32, 0
      %s35 = sadd.s32 %s34, 1
      %s36 = scalar_select %p33, %s34, %s35
      %p39 = pneg %p33
      %p40 = scmp.eq.s32.totalorder %s24, 1
      %p41 = por %p39, %p40
      %p42 = scmp.ne.s32.totalorder %s34, %s37
      %p43 = scmp.eq.s32.totalorder %s24, 0
      %p44 = por %p42, %p43
      %p45 = scmp.ne.s32.totalorder %s34, %s37
      %p46 = scmp.eq.s32.totalorder %s29, 1
      %p47 = por %p45, %p46
      %p48 = scmp.ne.s32.totalorder %s37, %s38
      %p49 = scmp.eq.s32.totalorder %s29, 0
      %p50 = por %p48, %p49
      %p51 = scmp.ne.s32.totalorder %s37, %s38
      %p52 = scmp.eq.s32.totalorder %s30, 1
      %p53 = por %p51, %p52
      %p55 = scmp.ne.s32.totalorder %s38, %s54
      %p56 = scmp.eq.s32.totalorder %s30, 0
      %p57 = por %p55, %p56
      %s58 = ssub.s32 %s24, %s31
      %p59 = scmp.eq.s32.totalorder %s58, 0
      %s61 = sadd.s32 %s60, 1
      %s62 = scalar_select %p59, %s60, %s61
      %p65 = pneg %p59
      %p66 = scmp.eq.s32.totalorder %s24, 1
      %p67 = por %p65, %p66
      %p68 = scmp.ne.s32.totalorder %s60, %s63
      %p69 = scmp.eq.s32.totalorder %s24, 0
      %p70 = por %p68, %p69
      %p71 = scmp.ne.s32.totalorder %s60, %s63
      %p72 = scmp.eq.s32.totalorder %s29, 1
      %p73 = por %p71, %p72
      %p74 = scmp.ne.s32.totalorder %s63, %s64
      %p75 = scmp.eq.s32.totalorder %s29, 0
      %p76 = por %p74, %p75
      %p77 = scmp.ne.s32.totalorder %s63, %s64
      %p78 = scmp.eq.s32.totalorder %s30, 1
      %p79 = por %p77, %p78
      %p81 = scmp.ne.s32.totalorder %s64, %s80
      %p82 = scmp.eq.s32.totalorder %s30, 0
      %p83 = por %p81, %p82
      %s84 = ssub.s32 %s24, %s31
      %p85 = scmp.eq.s32.totalorder %s84, 0
      %s87 = sadd.s32 %s86, 1
      %s88 = scalar_select %p85, %s86, %s87
      %p91 = pneg %p85
      %p92 = scmp.eq.s32.totalorder %s24, 1
      %p93 = por %p91, %p92
      %p94 = scmp.ne.s32.totalorder %s86, %s89
      %p95 = scmp.eq.s32.totalorder %s24, 0
      %p96 = por %p94, %p95
      %p97 = scmp.ne.s32.totalorder %s86, %s89
      %p98 = scmp.eq.s32.totalorder %s29, 1
      %p99 = por %p97, %p98
      %p100 = scmp.ne.s32.totalorder %s89, %s90
      %p101 = scmp.eq.s32.totalorder %s29, 0
      %p102 = por %p100, %p101
      %p103 = scmp.ne.s32.totalorder %s89, %s90
      %p104 = scmp.eq.s32.totalorder %s30, 1
      %p105 = por %p103, %p104
      %p107 = scmp.ne.s32.totalorder %s90, %s106
      %p108 = scmp.eq.s32.totalorder %s30, 0
      %p109 = por %p107, %p108
      %s111 = sadd.s32 %s110, 1
      %p114 = scmp.eq.s32.totalorder %s24, 1
      %p115 = scmp.ne.s32.totalorder %s110, %s112
      %p116 = scmp.eq.s32.totalorder %s24, 0
      %p117 = por %p115, %p116
      %p118 = scmp.ne.s32.totalorder %s110, %s112
      %p119 = scmp.eq.s32.totalorder %s29, 1
      %p120 = por %p118, %p119
      %p121 = scmp.ne.s32.totalorder %s112, %s113
      %p122 = scmp.eq.s32.totalorder %s29, 0
      %p123 = por %p121, %p122
      %p124 = scmp.ne.s32.totalorder %s112, %s113
      %p125 = scmp.eq.s32.totalorder %s30, 1
      %p126 = por %p124, %p125
      %p128 = scmp.ne.s32.totalorder %s113, %s127
      %p129 = scmp.eq.s32.totalorder %s30, 0
      %p130 = por %p128, %p129
      %s132 = sadd.s32 %s131, 1
      %p135 = scmp.eq.s32.totalorder %s24, 1
      %p136 = scmp.ne.s32.totalorder %s131, %s133
      %p137 = scmp.eq.s32.totalorder %s24, 0
      %p138 = por %p136, %p137
      %p139 = scmp.ne.s32.totalorder %s131, %s133
      %p140 = scmp.eq.s32.totalorder %s29, 1
      %p141 = por %p139, %p140
      %p142 = scmp.ne.s32.totalorder %s133, %s134
      %p143 = scmp.eq.s32.totalorder %s29, 0
      %p144 = por %p142, %p143
      %p145 = scmp.ne.s32.totalorder %s133, %s134
      %p146 = scmp.eq.s32.totalorder %s30, 1
      %p147 = por %p145, %p146
      %p149 = scmp.ne.s32.totalorder %s134, %s148
      %p150 = scmp.eq.s32.totalorder %s30, 0
      %p151 = por %p149, %p150
      %s153 = sadd.s32 %s152, 1
      %p156 = scmp.eq.s32.totalorder %s24, 1
      %p157 = scmp.ne.s32.totalorder %s152, %s154
      %p158 = scmp.eq.s32.totalorder %s24, 0
      %p159 = por %p157, %p158
      %p160 = scmp.ne.s32.totalorder %s152, %s154
      %p161 = scmp.eq.s32.totalorder %s29, 1
      %p162 = por %p160, %p161
      %p163 = scmp.ne.s32.totalorder %s154, %s155
      %p164 = scmp.eq.s32.totalorder %s29, 0
      %p165 = por %p163, %p164
      %p166 = scmp.ne.s32.totalorder %s154, %s155
      %p167 = scmp.eq.s32.totalorder %s30, 1
      %p168 = por %p166, %p167
      %p170 = scmp.ne.s32.totalorder %s155, %s169
      %p171 = scmp.eq.s32.totalorder %s30, 0
      %p172 = por %p170, %p171
      %s174 = sadd.s32 %s173, 1
      %p177 = scmp.eq.s32.totalorder %s24, 1
      %p178 = scmp.ne.s32.totalorder %s173, %s175
      %p179 = scmp.eq.s32.totalorder %s24, 0
      %p180 = por %p178, %p179
      %p181 = scmp.ne.s32.totalorder %s173, %s175
      %p182 = scmp.eq.s32.totalorder %s29, 1
      %p183 = por %p181, %p182
      %p184 = scmp.ne.s32.totalorder %s175, %s176
      %p185 = scmp.eq.s32.totalorder %s29, 0
      %p186 = por %p184, %p185
      %p187 = scmp.ne.s32.totalorder %s175, %s176
      %p188 = scmp.eq.s32.totalorder %s30, 1
      %p189 = por %p187, %p188
      %p191 = scmp.ne.s32.totalorder %s176, %s190
      %p192 = scmp.eq.s32.totalorder %s30, 0
      %p193 = por %p191, %p192
      %s195 = sadd.s32 %s194, 1
      %p198 = scmp.eq.s32.totalorder %s24, 1
      %p199 = scmp.ne.s32.totalorder %s194, %s196
      %p200 = scmp.eq.s32.totalorder %s24, 0
      %p201 = por %p199, %p200
      %p202 = scmp.ne.s32.totalorder %s194, %s196
      %p203 = scmp.eq.s32.totalorder %s29, 1
      %p204 = por %p202, %p203
      %p205 = scmp.ne.s32.totalorder %s196, %s197
      %p206 = scmp.eq.s32.totalorder %s29, 0
      %p207 = por %p205, %p206
      %p208 = scmp.ne.s32.totalorder %s196, %s197
      %p209 = scmp.eq.s32.totalorder %s30, 1
      %p210 = por %p208, %p209
      %p212 = scmp.ne.s32.totalorder %s197, %s211
      %p213 = scmp.eq.s32.totalorder %s30, 0
      %p214 = por %p212, %p213
      %s216 = sadd.s32 %s215, 1
      %p219 = scmp.eq.s32.totalorder %s24, 1
      %p220 = scmp.ne.s32.totalorder %s215, %s217
      %p221 = scmp.eq.s32.totalorder %s24, 0
      %p222 = por %p220, %p221
      %p223 = scmp.ne.s32.totalorder %s215, %s217
      %p224 = scmp.eq.s32.totalorder %s29, 1
      %p225 = por %p223, %p224
      %p226 = scmp.ne.s32.totalorder %s217, %s218
      %p227 = scmp.eq.s32.totalorder %s29, 0
      %p228 = por %p226, %p227
      %p229 = scmp.ne.s32.totalorder %s217, %s218
      %p230 = scmp.eq.s32.totalorder %s30, 1
      %p231 = por %p229, %p230
      %p233 = scmp.ne.s32.totalorder %s218, %s232
      %p234 = scmp.eq.s32.totalorder %s30, 0
      %p235 = por %p233, %p234
      %s237 = sadd.s32 %s236, 1
      %p240 = scmp.eq.s32.totalorder %s24, 1
      %p241 = scmp.ne.s32.totalorder %s236, %s238
      %p242 = scmp.eq.s32.totalorder %s24, 0
      %p243 = por %p241, %p242
      %p244 = scmp.ne.s32.totalorder %s236, %s238
      %p245 = scmp.eq.s32.totalorder %s29, 1
      %p246 = por %p244, %p245
      %p247 = scmp.ne.s32.totalorder %s238, %s239
      %p248 = scmp.eq.s32.totalorder %s29, 0
      %p249 = por %p247, %p248
      %p250 = scmp.ne.s32.totalorder %s238, %s239
      %p251 = scmp.eq.s32.totalorder %s30, 1
      %p252 = por %p250, %p251
      %p254 = scmp.ne.s32.totalorder %s239, %s253
      %p255 = scmp.eq.s32.totalorder %s30, 0
      %p256 = por %p254, %p255
      %s258 = sadd.s32 %s257, 1
      %p261 = scmp.eq.s32.totalorder %s24, 1
      %p262 = scmp.ne.s32.totalorder %s257, %s259
      %p263 = scmp.eq.s32.totalorder %s24, 0
      %p264 = por %p262, %p263
      %p265 = scmp.ne.s32.totalorder %s257, %s259
      %p266 = scmp.eq.s32.totalorder %s29, 1
      %p267 = por %p265, %p266
      %p268 = scmp.ne.s32.totalorder %s259, %s260
      %p269 = scmp.eq.s32.totalorder %s29, 0
      %p270 = por %p268, %p269
      %p271 = scmp.ne.s32.totalorder %s259, %s260
      %p272 = scmp.eq.s32.totalorder %s30, 1
      %p273 = por %p271, %p272
      %p275 = scmp.ne.s32.totalorder %s260, %s274
      %p276 = scmp.eq.s32.totalorder %s30, 0
      %p277 = por %p275, %p276
      %s279 = sadd.s32 %s278, 1
      %p282 = scmp.eq.s32.totalorder %s24, 1
      %p283 = scmp.ne.s32.totalorder %s278, %s280
      %p284 = scmp.eq.s32.totalorder %s24, 0
      %p285 = por %p283, %p284
      %p286 = scmp.ne.s32.totalorder %s278, %s280
      %p287 = scmp.eq.s32.totalorder %s29, 1
      %p288 = por %p286, %p287
      %p289 = scmp.ne.s32.totalorder %s280, %s281
      %p290 = scmp.eq.s32.totalorder %s29, 0
      %p291 = por %p289, %p290
      %p292 = scmp.ne.s32.totalorder %s280, %s281
      %p293 = scmp.eq.s32.totalorder %s30, 1
      %p294 = por %p292, %p293
      %p296 = scmp.ne.s32.totalorder %s281, %s295
      %p297 = scmp.eq.s32.totalorder %s30, 0
      %p298 = por %p296, %p297
      %s300 = sadd.s32 %s299, 1
      %p303 = scmp.eq.s32.totalorder %s24, 1
      %p304 = scmp.ne.s32.totalorder %s299, %s301
      %p305 = scmp.eq.s32.totalorder %s24, 0
      %p306 = por %p304, %p305
      %p307 = scmp.ne.s32.totalorder %s299, %s301
      %p308 = scmp.eq.s32.totalorder %s29, 1
      %p309 = por %p307, %p308
      %p310 = scmp.ne.s32.totalorder %s301, %s302
      %p311 = scmp.eq.s32.totalorder %s29, 0
      %p312 = por %p310, %p311
      %p313 = scmp.ne.s32.totalorder %s301, %s302
      %p314 = scmp.eq.s32.totalorder %s30, 1
      %p315 = por %p313, %p314
      %p317 = scmp.ne.s32.totalorder %s302, %s316
      %p318 = scmp.eq.s32.totalorder %s30, 0
      %p319 = por %p317, %p318
      %s321 = sadd.s32 %s320, 1
      %p324 = scmp.eq.s32.totalorder %s24, 1
      %p325 = scmp.ne.s32.totalorder %s320, %s322
      %p326 = scmp.eq.s32.totalorder %s24, 0
      %p327 = por %p325, %p326
      %p328 = scmp.ne.s32.totalorder %s320, %s322
      %p329 = scmp.eq.s32.totalorder %s29, 1
      %p330 = por %p328, %p329
      %p331 = scmp.ne.s32.totalorder %s322, %s323
      %p332 = scmp.eq.s32.totalorder %s29, 0
      %p333 = por %p331, %p332
      %p334 = scmp.ne.s32.totalorder %s322, %s323
      %p335 = scmp.eq.s32.totalorder %s30, 1
      %p336 = por %p334, %p335
      %p338 = scmp.ne.s32.totalorder %s323, %s337
      %p339 = scmp.eq.s32.totalorder %s30, 0
      %p340 = por %p338, %p339
      %s342 = sadd.s32 %s341, 1
      %p345 = scmp.eq.s32.totalorder %s24, 1
      %p346 = scmp.ne.s32.totalorder %s341, %s343
      %p347 = scmp.eq.s32.totalorder %s24, 0
      %p348 = por %p346, %p347
      %p349 = scmp.ne.s32.totalorder %s341, %s343
      %p350 = scmp.eq.s32.totalorder %s29, 1
      %p351 = por %p349, %p350
      %p352 = scmp.ne.s32.totalorder %s343, %s344
      %p353 = scmp.eq.s32.totalorder %s29, 0
      %p354 = por %p352, %p353
      %p355 = scmp.ne.s32.totalorder %s343, %s344
      %p356 = scmp.eq.s32.totalorder %s30, 1
      %p357 = por %p355, %p356
      %p359 = scmp.ne.s32.totalorder %s344, %s358
      %p360 = scmp.eq.s32.totalorder %s30, 0
      %p361 = por %p359, %p360
      %s362 = ssub.s32 %s24, %s31
      %p363 = scmp.eq.s32.totalorder %s362, 0
      %s365 = sadd.s32 %s364, 1
      %s366 = scalar_select %p363, %s364, %s365
      %p369 = pneg %p363
      %p370 = scmp.eq.s32.totalorder %s24, 1
      %p371 = por %p369, %p370
      %p372 = scmp.ne.s32.totalorder %s364, %s367
      %p373 = scmp.eq.s32.totalorder %s24, 0
      %p374 = por %p372, %p373
      %p375 = scmp.ne.s32.totalorder %s364, %s367
      %p376 = scmp.eq.s32.totalorder %s29, 1
      %p377 = por %p375, %p376
      %p378 = scmp.ne.s32.totalorder %s367, %s368
      %p379 = scmp.eq.s32.totalorder %s29, 0
      %p380 = por %p378, %p379
      %p381 = scmp.ne.s32.totalorder %s367, %s368
      %p382 = scmp.eq.s32.totalorder %s30, 1
      %p383 = por %p381, %p382
      %p385 = scmp.ne.s32.totalorder %s368, %s384
      %p386 = scmp.eq.s32.totalorder %s30, 0
      %p387 = por %p385, %p386
      %p388 = scmp.le.s32.totalorder 1, %s24
      %p389 = scmp.lt.s32.totalorder %s24, 3
      %p390 = pnand %p388, %p389
      %p391 = pneg %p390
      // Predicated region
      $region9: #{tpu_custom_call.1} parent=5 // pred_check
        _
      $region10: #{tpu_custom_call.1} parent=5 // pred_check_branch
        %393 = sbr.rel (%p390) target = $region12
      $region11: #{tpu_custom_call.1} parent=5 // pred_region
        %s394 = ssub.s32 %s24, 1
        // Predicated region
        $region13: #{tpu_custom_call.1} parent=11 // pred_check
          %p395 = pneg %p123
        $region14: #{tpu_custom_call.1} parent=11 // pred_check_branch
          %397 = sbr.rel (%p395) target = $region16
        $region15: #{tpu_custom_call.1} parent=11 // pred_region
          _
        $region16: #{tpu_custom_call.1} parent=11 // pred_fallthru
          _
        // Predicated region
        $region17: #{tpu_custom_call.1} parent=11 // pred_check
          %p398 = pneg %p144
        $region18: #{tpu_custom_call.1} parent=11 // pred_check_branch
          %400 = sbr.rel (%p398) target = $region20
        $region19: #{tpu_custom_call.1} parent=11 // pred_region
          _
        $region20: #{tpu_custom_call.1} parent=11 // pred_fallthru
          _
        // Predicated region
        $region21: #{tpu_custom_call.1} parent=11 // pred_check
          %p401 = pneg %p165
        $region22: #{tpu_custom_call.1} parent=11 // pred_check_branch
          %403 = sbr.rel (%p401) target = $region24
        $region23: #{tpu_custom_call.1} parent=11 // pred_region
          _
        $region24: #{tpu_custom_call.1} parent=11 // pred_fallthru
          _
        // Predicated region
        $region25: #{tpu_custom_call.1} parent=11 // pred_check
          %p404 = pneg %p186
        $region26: #{tpu_custom_call.1} parent=11 // pred_check_branch
          %406 = sbr.rel (%p404) target = $region28
        $region27: #{tpu_custom_call.1} parent=11 // pred_region
          _
        $region28: #{tpu_custom_call.1} parent=11 // pred_fallthru
          _
        // Predicated region
        $region29: #{tpu_custom_call.1} parent=11 // pred_check
          %p407 = pneg %p207
        $region30: #{tpu_custom_call.1} parent=11 // pred_check_branch
          %409 = sbr.rel (%p407) target = $region32
        $region31: #{tpu_custom_call.1} parent=11 // pred_region
          _
        $region32: #{tpu_custom_call.1} parent=11 // pred_fallthru
          _
        // Predicated region
        $region33: #{tpu_custom_call.1} parent=11 // pred_check
          %p410 = pneg %p228
        $region34: #{tpu_custom_call.1} parent=11 // pred_check_branch
          %412 = sbr.rel (%p410) target = $region36
        $region35: #{tpu_custom_call.1} parent=11 // pred_region
          _
        $region36: #{tpu_custom_call.1} parent=11 // pred_fallthru
          _
        // Predicated region
        $region37: #{tpu_custom_call.1} parent=11 // pred_check
          %p413 = pneg %p249
        $region38: #{tpu_custom_call.1} parent=11 // pred_check_branch
          %415 = sbr.rel (%p413) target = $region40
        $region39: #{tpu_custom_call.1} parent=11 // pred_region
          _
        $region40: #{tpu_custom_call.1} parent=11 // pred_fallthru
          _
        // Predicated region
        $region41: #{tpu_custom_call.1} parent=11 // pred_check
          %p416 = pneg %p270
        $region42: #{tpu_custom_call.1} parent=11 // pred_check_branch
          %418 = sbr.rel (%p416) target = $region44
        $region43: #{tpu_custom_call.1} parent=11 // pred_region
          _
        $region44: #{tpu_custom_call.1} parent=11 // pred_fallthru
          _
        // Predicated region
        $region45: #{tpu_custom_call.1} parent=11 // pred_check
          %p419 = pneg %p291
        $region46: #{tpu_custom_call.1} parent=11 // pred_check_branch
          %421 = sbr.rel (%p419) target = $region48
        $region47: #{tpu_custom_call.1} parent=11 // pred_region
          _
        $region48: #{tpu_custom_call.1} parent=11 // pred_fallthru
          _
        // Predicated region
        $region49: #{tpu_custom_call.1} parent=11 // pred_check
          %p422 = pneg %p312
        $region50: #{tpu_custom_call.1} parent=11 // pred_check_branch
          %424 = sbr.rel (%p422) target = $region52
        $region51: #{tpu_custom_call.1} parent=11 // pred_region
          _
        $region52: #{tpu_custom_call.1} parent=11 // pred_fallthru
          _
        // Predicated region
        $region53: #{tpu_custom_call.1} parent=11 // pred_check
          %p425 = pneg %p333
        $region54: #{tpu_custom_call.1} parent=11 // pred_check_branch
          %427 = sbr.rel (%p425) target = $region56
        $region55: #{tpu_custom_call.1} parent=11 // pred_region
          _
        $region56: #{tpu_custom_call.1} parent=11 // pred_fallthru
          _
        // Predicated region
        $region57: #{tpu_custom_call.1} parent=11 // pred_check
          %p428 = pneg %p354
        $region58: #{tpu_custom_call.1} parent=11 // pred_check_branch
          %430 = sbr.rel (%p428) target = $region60
        $region59: #{tpu_custom_call.1} parent=11 // pred_region
          _
        $region60: #{tpu_custom_call.1} parent=11 // pred_fallthru
          _
      $region12: #{tpu_custom_call.1} parent=5 // pred_fallthru
        _
      %p431 = scmp.lt.s32.totalorder %s24, 2
      // Predicated region
      $region61: #{tpu_custom_call.1} parent=5 // pred_check
        %p432 = pneg %p431
      $region62: #{tpu_custom_call.1} parent=5 // pred_check_branch
        %434 = sbr.rel (%p432) target = $region64
      $region63: #{tpu_custom_call.1} parent=5 // pred_region
        // Predicated region
        $region65: #{tpu_custom_call.1} parent=63 // pred_check
          %p435 = pneg %p44
        $region66: #{tpu_custom_call.1} parent=63 // pred_check_branch
          %437 = sbr.rel (%p435) target = $region68
        $region67: #{tpu_custom_call.1} parent=63 // pred_region
          %p438 = scmp.lt.s32.totalorder %s24, 1
          %s439 = scalar_select %p438, %s24, 1
          %s440 = smul.addr %s439, 4
          %s441 = scalar_lea.vmem %s0, %s440
        $region68: #{tpu_custom_call.1} parent=63 // pred_fallthru
          _
        // Predicated region
        $region69: #{tpu_custom_call.1} parent=63 // pred_check
          %p442 = pneg %p70
        $region70: #{tpu_custom_call.1} parent=63 // pred_check_branch
          %444 = sbr.rel (%p442) target = $region72
        $region71: #{tpu_custom_call.1} parent=63 // pred_region
          %p445 = scmp.lt.s32.totalorder %s24, 1
          %s446 = scalar_select %p445, %s24, 1
          %s447 = scalar_lea.vmem %s1, %s446
        $region72: #{tpu_custom_call.1} parent=63 // pred_fallthru
          _
        // Predicated region
        $region73: #{tpu_custom_call.1} parent=63 // pred_check
          %p448 = pneg %p96
        $region74: #{tpu_custom_call.1} parent=63 // pred_check_branch
          %450 = sbr.rel (%p448) target = $region76
        $region75: #{tpu_custom_call.1} parent=63 // pred_region
          %p451 = scmp.lt.s32.totalorder %s24, 1
          %s452 = scalar_select %p451, %s24, 1
          %s453 = smul.addr %s452, 8
          %s454 = scalar_lea.vmem %s2, %s453
        $region76: #{tpu_custom_call.1} parent=63 // pred_fallthru
          _
      $region64: #{tpu_custom_call.1} parent=5 // pred_fallthru
        _
      %p455 = scmp.le.s32.totalorder 1, %s24
      %p456 = scmp.lt.s32.totalorder %s24, 3
      %p457 = pnand %p455, %p456
      %p458 = pneg %p457
      // Predicated region
      $region77: #{tpu_custom_call.1} parent=5 // pred_check
        _
      $region78: #{tpu_custom_call.1} parent=5 // pred_check_branch
        %460 = sbr.rel (%p457) target = $region80
      $region79: #{tpu_custom_call.1} parent=5 // pred_region
        %s461 = ssub.s32 %s24, 1
        %p462 = scmp.lt.s32.totalorder %s29, 1
        %s463 = scalar_select %p462, %s29, 1
        %s464 = smul.addr %s463, 4
        %s465 = scalar_lea.vmem %s0, %s464
        %p466 = pneg %p50
        %p467 = pneg %p47
        %p468 = scmp.lt.s32.totalorder %s29, 1
        %s469 = scalar_select %p468, %s29, 1
        %s470 = scalar_lea.vmem %s1, %s469
        %p471 = pneg %p76
        %p472 = pneg %p73
        %p473 = scmp.lt.s32.totalorder %s29, 1
        %s474 = scalar_select %p473, %s29, 1
        %s475 = smul.addr %s474, 8
        %s476 = scalar_lea.vmem %s2, %s475
        %p477 = pneg %p102
        %p478 = pneg %p99
        %p479 = pneg %p123
        %p480 = pneg %p120
        %p481 = pneg %p144
        %p482 = pneg %p141
        %p483 = pneg %p165
        %p484 = pneg %p162
        %p485 = pneg %p186
        %p486 = pneg %p183
        %p487 = pneg %p207
        %p488 = pneg %p204
        %p489 = pneg %p228
        %p490 = pneg %p225
        %p491 = pneg %p249
        %p492 = pneg %p246
        %p493 = pneg %p270
        %p494 = pneg %p267
        %p495 = pneg %p291
        %p496 = pneg %p288
        %p497 = pneg %p312
        %p498 = pneg %p309
        %p499 = pneg %p333
        %p500 = pneg %p330
        %p501 = pneg %p354
        %p502 = pneg %p351
        %p503 = pneg %p380
        %p504 = pneg %p377
        %s505 = sand.u32 %s367, 1
        %s506 = scalar_lea.sflag [#allocation3], %s505
        %s507 = sand.u32 %s367, 1
        %s508 = smul.addr %s507, 4
        %s509 = scalar_lea.vmem [#allocation2], %s508
        %p510 = scmp.lt.s32.totalorder %s29, 1
        %s511 = scalar_select %p510, %s29, 1
        %s512 = smul.addr %s511, 4
        %s513 = scalar_lea.vmem %s0, %s512
        %p514 = scmp.lt.s32.totalorder %s29, 1
        %s515 = scalar_select %p514, %s29, 1
        %s516 = scalar_lea.vmem %s1, %s515
        %p517 = scmp.lt.s32.totalorder %s29, 1
        %s518 = scalar_select %p517, %s29, 1
        %s519 = smul.addr %s518, 8
        %s520 = scalar_lea.vmem %s2, %s519
        %v522 = vld [vmem:[%s513] sm:$0xf]
        %v523 = vld [vmem:[%s516] sm:$0x1]
        %v524 = vld [vmem:[%s520] sm:$0xff]
        %v525 = vld [vmem:[%s3] sm:$0xf]
        %v526 = vld [vmem:[%s3 + $0x4] sm:$0xf]
        %v527 = vld [vmem:[%s3 + $0x8] sm:$0xf]
        %v528 = vld [vmem:[%s3 + $0xc] sm:$0xf]
        %v529 = vld [vmem:[%s4] sm:$0x1]
        %v530 = vld [vmem:[%s5] sm:$0xf]
        %v531 = vld [vmem:[%s5 + $0x4] sm:$0xf]
        %v532 = vld [vmem:[%s5 + $0x8] sm:$0xf]
        %v533 = vld [vmem:[%s5 + $0xc] sm:$0xf]
        %v534 = vld [vmem:[%s6] sm:$0x1]
        %v535 = vld [vmem:[%s7] sm:$0x1]
        %v536 = vld [vmem:[%s8] sm:$0x1]
        %v538 = vlaneseq
        %v539 = vshrl.u32 %v538, 7
        %v540 = vsub.s32 0, %v539
        %v541 = vrot.slane %v529, %v540
        %v547 = vunpack.c.l.b16 %v525
        %v548 = vunpack.c.l.b16 %v526
        %v549 = vunpack.c.l.b16 %v527
        %v550 = vunpack.c.l.b16 %v528
        %v551 = vpack.c.b16 %v548, %v547
        %v552 = vpack.c.b16 %v550, %v549
        %vm555 = vcmask 261120
        %v557 = vsel %vm555, %v522, 0
        %559 = vmatprep.subr.bf16.mxu0 0
        %560 = vmatpush1.bf16.msra.mxu0 %v551
        %561 = vmatprep.subr.bf16.mxu0 0
        %562 = vmatpush1.bf16.msra.mxu0 %v552
        %563 = vmatprep.subr.bf16.mxu0 0
        %564 = vmatpush1.bf16.msra.mxu0 0
        %565 = vmatprep.subr.bf16.mxu0 0
        %566 = vmatpush1.bf16.msra.mxu0 0
        %567 = vmatprep.subr.bf16.mxu0 0
        %568 = vmatpush1.bf16.msra.mxu0 0
        %569 = vmatprep.subr.bf16.mxu0 0
        %570 = vmatpush1.bf16.msra.mxu0 0
        %571 = vmatprep.subr.bf16.mxu0 0
        %572 = vmatpush1.bf16.msra.mxu0 0
        %573 = vmatprep.subr.bf16.mxu0 0
        %574 = vmatpush1.bf16.msra.mxu0 0
        %575 = vmatprep.subr.bf16.mxu0 0
        %576 = vmatpush1.bf16.msra.mxu0 0
        %577 = vmatprep.subr.bf16.mxu0 0
        %578 = vmatpush1.bf16.msra.mxu0 0
        %579 = vmatprep.subr.bf16.mxu0 0
        %580 = vmatpush1.bf16.msra.mxu0 0
        %581 = vmatprep.subr.bf16.mxu0 0
        %582 = vmatpush1.bf16.msra.mxu0 0
        %583 = vmatprep.subr.bf16.mxu0 0
        %584 = vmatpush1.bf16.msra.mxu0 0
        %585 = vmatprep.subr.bf16.mxu0 0
        %586 = vmatpush1.bf16.msra.mxu0 0
        %587 = vmatprep.subr.bf16.mxu0 0
        %588 = vmatpush1.bf16.msra.mxu0 0
        %589 = vmatprep.subr.bf16.mxu0 0
        %590 = vmatpush1.bf16.msra.mxu0 0
        %591 = vmatprep.mubr.bf16.mxu0 0
        %592 = vmatmul.mubr.bf16.gmra.mrb[0].mxu0 %v557
        %v593 = vpop.f32.mrb[0].mxu0
        %v594 = vadd.f32 %v541, %v593
        %v595 = vpop.f32.mrb[0].mxu0
        %v596 = vpop.f32.mrb[0].mxu0
        %v597 = vpop.f32.mrb[0].mxu0
        %598 = vdwg.mxu0
        %v599 = vmul.f32 %v594, 0.35355338
        %v600 = vunpack.c.l.bf16 %v522
        %v601 = vpack.c.bf16 %v599, %v599
        %v602 = vpack.c.bf16 %v594, %v594
        %604 = vrot.lane.b32.xlu0 %v602, 96
        %v605 = vpop.permute.xlu0 %604
        %vm606 = vcmask 64512
        %v608 = vsel %vm606, %v601, 0
        %v611 = vsel %vm606, %v605, 0
        %613 = vmatprep.subr.bf16.mxu0 0
        %614 = vmatpush1.bf16.xpose.msra.mxu0 %v611
        %615 = vmatprep.subr.bf16.mxu0 0
        %616 = vmatpush1.bf16.xpose.msra.mxu0 0
        %617 = vmatprep.subr.bf16.mxu0 0
        %618 = vmatpush1.bf16.xpose.msra.mxu0 0
        %619 = vmatprep.subr.bf16.mxu0 0
        %620 = vmatpush1.bf16.xpose.msra.mxu0 0
        %621 = vmatprep.subr.bf16.mxu0 0
        %622 = vmatpush1.bf16.xpose.msra.mxu0 0
        %623 = vmatprep.subr.bf16.mxu0 0
        %624 = vmatpush1.bf16.xpose.msra.mxu0 0
        %625 = vmatprep.subr.bf16.mxu0 0
        %626 = vmatpush1.bf16.xpose.msra.mxu0 0
        %627 = vmatprep.subr.bf16.mxu0 0
        %628 = vmatpush1.bf16.xpose.msra.mxu0 0
        %629 = vmatprep.subr.bf16.mxu0 0
        %630 = vmatpush1.bf16.xpose.msra.mxu0 0
        %631 = vmatprep.subr.bf16.mxu0 0
        %632 = vmatpush1.bf16.xpose.msra.mxu0 0
        %633 = vmatprep.subr.bf16.mxu0 0
        %634 = vmatpush1.bf16.xpose.msra.mxu0 0
        %635 = vmatprep.subr.bf16.mxu0 0
        %636 = vmatpush1.bf16.xpose.msra.mxu0 0
        %637 = vmatprep.subr.bf16.mxu0 0
        %638 = vmatpush1.bf16.xpose.msra.mxu0 0
        %639 = vmatprep.subr.bf16.mxu0 0
        %640 = vmatpush1.bf16.xpose.msra.mxu0 0
        %641 = vmatprep.subr.bf16.mxu0 0
        %642 = vmatpush1.bf16.xpose.msra.mxu0 0
        %643 = vmatprep.subr.bf16.mxu0 0
        %644 = vmatpush1.bf16.xpose.msra.mxu0 0
        %645 = vmatprep.mubr.bf16.mxu0 0
        %646 = vmatmul.mubr.bf16.gmra.mrb[0].mxu0 %v608
        %v647 = vpop.f32.mrb[0].mxu0
        %v648 = vadd.f32 0.0, %v647
        %v649 = vpop.f32.mrb[0].mxu0
        %v650 = vpop.f32.mrb[0].mxu0
        %v651 = vpop.f32.mrb[0].mxu0
        %652 = vdwg.mxu0
        %v654 = vlaneseq
        %v655 = vshrl.u32 %v654, 7
        %v656 = vsub.s32 0, %v655
        %v657 = vrot.slane %v523, %v656
        %vm659 = vcmp.gt.f32.partialorder %v657, 0.0
        %v660 = vsel %vm659, -1e+30, %v648
        %v661 = vsel %vm606, %v660, -inf
        %662 = vmax.xlane.f32.xlu0 %v661
        %v663 = vpop.xlane.xlu0 %662
        %v664 = vmax.f32 %v663, -1e+30
        %v665 = vsub.f32 -1e+30, %v664
        %v666 = vmul.f32 %v665, 1.442695
        %v667 = vpow.pop %v666
        %v668 = vsub.f32 %v660, %v664
        %v669 = vmul.f32 %v668, 1.442695
        %v670 = vpow.pop %v669
        %v671 = vmul.f32 %v667, 0.0
        %v672 = vsel %vm606, %v670, 0.0
        %673 = vadd.xlane.f32.xlu0 %v672
        %v674 = vpop.xlane.xlu0 %673
        %v675 = vadd.f32 %v671, %v674
        %v676 = vpack.c.bf16 %v670, %v670
        %677 = vrot.lane.b32.xlu0 %v602, 64
        %v678 = vpop.permute.xlu0 %677
        %v680 = vsel %vm606, %v676, 0
        %vm682 = vcmask 1043456
        %v684 = vsel %vm682, %v678, 0
        %686 = vmatprep.subr.bf16.mxu0 0
        %687 = vmatpush1.bf16.msra.mxu0 %v684
        %688 = vmatprep.subr.bf16.mxu0 0
        %689 = vmatpush1.bf16.msra.mxu0 0
        %690 = vmatprep.subr.bf16.mxu0 0
        %691 = vmatpush1.bf16.msra.mxu0 0
        %692 = vmatprep.subr.bf16.mxu0 0
        %693 = vmatpush1.bf16.msra.mxu0 0
        %694 = vmatprep.subr.bf16.mxu0 0
        %695 = vmatpush1.bf16.msra.mxu0 0
        %696 = vmatprep.subr.bf16.mxu0 0
        %697 = vmatpush1.bf16.msra.mxu0 0
        %698 = vmatprep.subr.bf16.mxu0 0
        %699 = vmatpush1.bf16.msra.mxu0 0
        %700 = vmatprep.subr.bf16.mxu0 0
        %701 = vmatpush1.bf16.msra.mxu0 0
        %702 = vmatprep.subr.bf16.mxu0 0
        %703 = vmatpush1.bf16.msra.mxu0 0
        %704 = vmatprep.subr.bf16.mxu0 0
        %705 = vmatpush1.bf16.msra.mxu0 0
        %706 = vmatprep.subr.bf16.mxu0 0
        %707 = vmatpush1.bf16.msra.mxu0 0
        %708 = vmatprep.subr.bf16.mxu0 0
        %709 = vmatpush1.bf16.msra.mxu0 0
        %710 = vmatprep.subr.bf16.mxu0 0
        %711 = vmatpush1.bf16.msra.mxu0 0
        %712 = vmatprep.subr.bf16.mxu0 0
        %713 = vmatpush1.bf16.msra.mxu0 0
        %714 = vmatprep.subr.bf16.mxu0 0
        %715 = vmatpush1.bf16.msra.mxu0 0
        %716 = vmatprep.subr.bf16.mxu0 0
        %717 = vmatpush1.bf16.msra.mxu0 0
        %718 = vmatprep.mubr.bf16.mxu0 0
        %719 = vmatmul.mubr.bf16.gmra.mrb[0].mxu0 %v680
        %v720 = vpop.f32.mrb[0].mxu0
        %v721 = vadd.f32 0.0, %v720
        %v722 = vpop.f32.mrb[0].mxu0
        %v723 = vpop.f32.mrb[0].mxu0
        %v724 = vpop.f32.mrb[0].mxu0
        %725 = vdwg.mxu0
        %v726 = vadd.f32 %v671, %v721
        %v727 = vrcp.pop %v675
        %v728 = vmul.f32 1.0, %v727
        %v729 = vmul.f32 %v726, %v728
        %v730 = vpack.c.bf16 %v729, %v729
        %732 = vrot.lane.b32.xlu0 %v601, 120
        %v733 = vpop.permute.xlu0 %732
        %734 = vrot.lane.b32.xlu0 %v602, 88
        %v735 = vpop.permute.xlu0 %734
        %v737 = vsel %vm606, %v733, 0
        %v740 = vsel %vm606, %v735, 0
        %742 = vmatprep.subr.bf16.mxu0 0
        %743 = vmatpush1.bf16.xpose.msra.mxu0 %v740
        %744 = vmatprep.subr.bf16.mxu0 0
        %745 = vmatpush1.bf16.xpose.msra.mxu0 0
        %746 = vmatprep.subr.bf16.mxu0 0
        %747 = vmatpush1.bf16.xpose.msra.mxu0 0
        %748 = vmatprep.subr.bf16.mxu0 0
        %749 = vmatpush1.bf16.xpose.msra.mxu0 0
        %750 = vmatprep.subr.bf16.mxu0 0
        %751 = vmatpush1.bf16.xpose.msra.mxu0 0
        %752 = vmatprep.subr.bf16.mxu0 0
        %753 = vmatpush1.bf16.xpose.msra.mxu0 0
        %754 = vmatprep.subr.bf16.mxu0 0
        %755 = vmatpush1.bf16.xpose.msra.mxu0 0
        %756 = vmatprep.subr.bf16.mxu0 0
        %757 = vmatpush1.bf16.xpose.msra.mxu0 0
        %758 = vmatprep.subr.bf16.mxu0 0
        %759 = vmatpush1.bf16.xpose.msra.mxu0 0
        %760 = vmatprep.subr.bf16.mxu0 0
        %761 = vmatpush1.bf16.xpose.msra.mxu0 0
        %762 = vmatprep.subr.bf16.mxu0 0
        %763 = vmatpush1.bf16.xpose.msra.mxu0 0
        %764 = vmatprep.subr.bf16.mxu0 0
        %765 = vmatpush1.bf16.xpose.msra.mxu0 0
        %766 = vmatprep.subr.bf16.mxu0 0
        %767 = vmatpush1.bf16.xpose.msra.mxu0 0
        %768 = vmatprep.subr.bf16.mxu0 0
        %769 = vmatpush1.bf16.xpose.msra.mxu0 0
        %770 = vmatprep.subr.bf16.mxu0 0
        %771 = vmatpush1.bf16.xpose.msra.mxu0 0
        %772 = vmatprep.subr.bf16.mxu0 0
        %773 = vmatpush1.bf16.xpose.msra.mxu0 0
        %774 = vmatprep.mubr.bf16.mxu0 0
        %775 = vmatmul.mubr.bf16.gmra.mrb[0].mxu0 %v737
        %v776 = vpop.f32.mrb[0].mxu0
        %v777 = vadd.f32 0.0, %v776
        %v778 = vpop.f32.mrb[0].mxu0
        %v779 = vpop.f32.mrb[0].mxu0
        %v780 = vpop.f32.mrb[0].mxu0
        %781 = vdwg.mxu0
        %v782 = vsel %vm659, -1e+30, %v777
        %v783 = vsel %vm606, %v782, -inf
        %784 = vmax.xlane.f32.xlu0 %v783
        %v785 = vpop.xlane.xlu0 %784
        %v786 = vmax.f32 %v785, -1e+30
        %v787 = vsub.f32 -1e+30, %v786
        %v788 = vmul.f32 %v787, 1.442695
        %v789 = vpow.pop %v788
        %v790 = vsub.f32 %v782, %v786
        %v791 = vmul.f32 %v790, 1.442695
        %v792 = vpow.pop %v791
        %v793 = vmul.f32 %v789, 0.0
        %v794 = vsel %vm606, %v792, 0.0
        %795 = vadd.xlane.f32.xlu0 %v794
        %v796 = vpop.xlane.xlu0 %795
        %v797 = vadd.f32 %v793, %v796
        %v798 = vpack.c.bf16 %v792, %v792
        %799 = vrot.lane.b32.xlu0 %v602, 56
        %v800 = vpop.permute.xlu0 %799
        %v802 = vsel %vm606, %v798, 0
        %v805 = vsel %vm682, %v800, 0
        %807 = vmatprep.subr.bf16.mxu0 0
        %808 = vmatpush1.bf16.msra.mxu0 %v805
        %809 = vmatprep.subr.bf16.mxu0 0
        %810 = vmatpush1.bf16.msra.mxu0 0
        %811 = vmatprep.subr.bf16.mxu0 0
        %812 = vmatpush1.bf16.msra.mxu0 0
        %813 = vmatprep.subr.bf16.mxu0 0
        %814 = vmatpush1.bf16.msra.mxu0 0
        %815 = vmatprep.subr.bf16.mxu0 0
        %816 = vmatpush1.bf16.msra.mxu0 0
        %817 = vmatprep.subr.bf16.mxu0 0
        %818 = vmatpush1.bf16.msra.mxu0 0
        %819 = vmatprep.subr.bf16.mxu0 0
        %820 = vmatpush1.bf16.msra.mxu0 0
        %821 = vmatprep.subr.bf16.mxu0 0
        %822 = vmatpush1.bf16.msra.mxu0 0
        %823 = vmatprep.subr.bf16.mxu0 0
        %824 = vmatpush1.bf16.msra.mxu0 0
        %825 = vmatprep.subr.bf16.mxu0 0
        %826 = vmatpush1.bf16.msra.mxu0 0
        %827 = vmatprep.subr.bf16.mxu0 0
        %828 = vmatpush1.bf16.msra.mxu0 0
        %829 = vmatprep.subr.bf16.mxu0 0
        %830 = vmatpush1.bf16.msra.mxu0 0
        %831 = vmatprep.subr.bf16.mxu0 0
        %832 = vmatpush1.bf16.msra.mxu0 0
        %833 = vmatprep.subr.bf16.mxu0 0
        %834 = vmatpush1.bf16.msra.mxu0 0
        %835 = vmatprep.subr.bf16.mxu0 0
        %836 = vmatpush1.bf16.msra.mxu0 0
        %837 = vmatprep.subr.bf16.mxu0 0
        %838 = vmatpush1.bf16.msra.mxu0 0
        %839 = vmatprep.mubr.bf16.mxu0 0
        %840 = vmatmul.mubr.bf16.gmra.mrb[0].mxu0 %v802
        %v841 = vpop.f32.mrb[0].mxu0
        %v842 = vadd.f32 0.0, %v841
        %v843 = vpop.f32.mrb[0].mxu0
        %v844 = vpop.f32.mrb[0].mxu0
        %v845 = vpop.f32.mrb[0].mxu0
        %846 = vdwg.mxu0
        %v847 = vadd.f32 %v793, %v842
        %v848 = vrcp.pop %v797
        %v849 = vmul.f32 1.0, %v848
        %v850 = vmul.f32 %v847, %v849
        %v851 = vpack.c.bf16 %v850, %v850
        %v853 = vsel %vm606, %v851, 0
        %v856 = vsel %vm682, %v531, 0
        %858 = vmatprep.subr.bf16.mxu0 0
        %859 = vmatpush1.bf16.msra.mxu0 %v856
        %860 = vmatprep.subr.bf16.mxu0 0
        %861 = vmatpush1.bf16.msra.mxu0 0
        %862 = vmatprep.subr.bf16.mxu0 0
        %863 = vmatpush1.bf16.msra.mxu0 0
        %864 = vmatprep.subr.bf16.mxu0 0
        %865 = vmatpush1.bf16.msra.mxu0 0
        %866 = vmatprep.subr.bf16.mxu0 0
        %867 = vmatpush1.bf16.msra.mxu0 0
        %868 = vmatprep.subr.bf16.mxu0 0
        %869 = vmatpush1.bf16.msra.mxu0 0
        %870 = vmatprep.subr.bf16.mxu0 0
        %871 = vmatpush1.bf16.msra.mxu0 0
        %872 = vmatprep.subr.bf16.mxu0 0
        %873 = vmatpush1.bf16.msra.mxu0 0
        %874 = vmatprep.subr.bf16.mxu0 0
        %875 = vmatpush1.bf16.msra.mxu0 0
        %876 = vmatprep.subr.bf16.mxu0 0
        %877 = vmatpush1.bf16.msra.mxu0 0
        %878 = vmatprep.subr.bf16.mxu0 0
        %879 = vmatpush1.bf16.msra.mxu0 0
        %880 = vmatprep.subr.bf16.mxu0 0
        %881 = vmatpush1.bf16.msra.mxu0 0
        %882 = vmatprep.subr.bf16.mxu0 0
        %883 = vmatpush1.bf16.msra.mxu0 0
        %884 = vmatprep.subr.bf16.mxu0 0
        %885 = vmatpush1.bf16.msra.mxu0 0
        %886 = vmatprep.subr.bf16.mxu0 0
        %887 = vmatpush1.bf16.msra.mxu0 0
        %888 = vmatprep.subr.bf16.mxu0 0
        %889 = vmatpush1.bf16.msra.mxu0 0
        %890 = vmatprep.mubr.bf16.mxu0 0
        %891 = vmatmul.mubr.bf16.gmra.mrb[0].mxu0 %v853
        %v892 = vpop.f32.mrb[0].mxu0
        %v893 = vadd.f32 0.0, %v892
        %v894 = vpop.f32.mrb[0].mxu0
        %v895 = vpop.f32.mrb[0].mxu0
        %v896 = vpop.f32.mrb[0].mxu0
        %897 = vdwg.mxu0
        %v899 = vsel %vm606, %v730, 0
        %v902 = vsel %vm682, %v530, 0
        %904 = vmatprep.subr.bf16.mxu0 0
        %905 = vmatpush1.bf16.msra.mxu0 %v902
        %906 = vmatprep.subr.bf16.mxu0 0
        %907 = vmatpush1.bf16.msra.mxu0 0
        %908 = vmatprep.subr.bf16.mxu0 0
        %909 = vmatpush1.bf16.msra.mxu0 0
        %910 = vmatprep.subr.bf16.mxu0 0
        %911 = vmatpush1.bf16.msra.mxu0 0
        %912 = vmatprep.subr.bf16.mxu0 0
        %913 = vmatpush1.bf16.msra.mxu0 0
        %914 = vmatprep.subr.bf16.mxu0 0
        %915 = vmatpush1.bf16.msra.mxu0 0
        %916 = vmatprep.subr.bf16.mxu0 0
        %917 = vmatpush1.bf16.msra.mxu0 0
        %918 = vmatprep.subr.bf16.mxu0 0
        %919 = vmatpush1.bf16.msra.mxu0 0
        %920 = vmatprep.subr.bf16.mxu0 0
        %921 = vmatpush1.bf16.msra.mxu0 0
        %922 = vmatprep.subr.bf16.mxu0 0
        %923 = vmatpush1.bf16.msra.mxu0 0
        %924 = vmatprep.subr.bf16.mxu0 0
        %925 = vmatpush1.bf16.msra.mxu0 0
        %926 = vmatprep.subr.bf16.mxu0 0
        %927 = vmatpush1.bf16.msra.mxu0 0
        %928 = vmatprep.subr.bf16.mxu0 0
        %929 = vmatpush1.bf16.msra.mxu0 0
        %930 = vmatprep.subr.bf16.mxu0 0
        %931 = vmatpush1.bf16.msra.mxu0 0
        %932 = vmatprep.subr.bf16.mxu0 0
        %933 = vmatpush1.bf16.msra.mxu0 0
        %934 = vmatprep.subr.bf16.mxu0 0
        %935 = vmatpush1.bf16.msra.mxu0 0
        %936 = vmatprep.mubr.bf16.mxu0 0
        %937 = vmatmul.mubr.bf16.gmra.mrb[0].mxu0 %v899
        %v938 = vpop.f32.mrb[0].mxu0
        %v939 = vadd.f32 %v893, %v938
        %v940 = vpop.f32.mrb[0].mxu0
        %v941 = vpop.f32.mrb[0].mxu0
        %v942 = vpop.f32.mrb[0].mxu0
        %943 = vdwg.mxu0
        %944 = vrot.lane.b32.xlu0 %v601, 112
        %v945 = vpop.permute.xlu0 %944
        %946 = vrot.lane.b32.xlu0 %v602, 80
        %v947 = vpop.permute.xlu0 %946
        %v949 = vsel %vm606, %v945, 0
        %v952 = vsel %vm606, %v947, 0
        %954 = vmatprep.subr.bf16.mxu0 0
        %955 = vmatpush1.bf16.xpose.msra.mxu0 %v952
        %956 = vmatprep.subr.bf16.mxu0 0
        %957 = vmatpush1.bf16.xpose.msra.mxu0 0
        %958 = vmatprep.subr.bf16.mxu0 0
        %959 = vmatpush1.bf16.xpose.msra.mxu0 0
        %960 = vmatprep.subr.bf16.mxu0 0
        %961 = vmatpush1.bf16.xpose.msra.mxu0 0
        %962 = vmatprep.subr.bf16.mxu0 0
        %963 = vmatpush1.bf16.xpose.msra.mxu0 0
        %964 = vmatprep.subr.bf16.mxu0 0
        %965 = vmatpush1.bf16.xpose.msra.mxu0 0
        %966 = vmatprep.subr.bf16.mxu0 0
        %967 = vmatpush1.bf16.xpose.msra.mxu0 0
        %968 = vmatprep.subr.bf16.mxu0 0
        %969 = vmatpush1.bf16.xpose.msra.mxu0 0
        %970 = vmatprep.subr.bf16.mxu0 0
        %971 = vmatpush1.bf16.xpose.msra.mxu0 0
        %972 = vmatprep.subr.bf16.mxu0 0
        %973 = vmatpush1.bf16.xpose.msra.mxu0 0
        %974 = vmatprep.subr.bf16.mxu0 0
        %975 = vmatpush1.bf16.xpose.msra.mxu0 0
        %976 = vmatprep.subr.bf16.mxu0 0
        %977 = vmatpush1.bf16.xpose.msra.mxu0 0
        %978 = vmatprep.subr.bf16.mxu0 0
        %979 = vmatpush1.bf16.xpose.msra.mxu0 0
        %980 = vmatprep.subr.bf16.mxu0 0
        %981 = vmatpush1.bf16.xpose.msra.mxu0 0
        %982 = vmatprep.subr.bf16.mxu0 0
        %983 = vmatpush1.bf16.xpose.msra.mxu0 0
        %984 = vmatprep.subr.bf16.mxu0 0
        %985 = vmatpush1.bf16.xpose.msra.mxu0 0
        %986 = vmatprep.mubr.bf16.mxu0 0
        %987 = vmatmul.mubr.bf16.gmra.mrb[0].mxu0 %v949
        %v988 = vpop.f32.mrb[0].mxu0
        %v989 = vadd.f32 0.0, %v988
        %v990 = vpop.f32.mrb[0].mxu0
        %v991 = vpop.f32.mrb[0].mxu0
        %v992 = vpop.f32.mrb[0].mxu0
        %993 = vdwg.mxu0
        %v994 = vsel %vm659, -1e+30, %v989
        %v995 = vsel %vm606, %v994, -inf
        %996 = vmax.xlane.f32.xlu0 %v995
        %v997 = vpop.xlane.xlu0 %996
        %v998 = vmax.f32 %v997, -1e+30
        %v999 = vsub.f32 -1e+30, %v998
        %v1000 = vmul.f32 %v999, 1.442695
        %v1001 = vpow.pop %v1000
        %v1002 = vsub.f32 %v994, %v998
        %v1003 = vmul.f32 %v1002, 1.442695
        %v1004 = vpow.pop %v1003
        %v1005 = vmul.f32 %v1001, 0.0
        %v1006 = vsel %vm606, %v1004, 0.0
        %1007 = vadd.xlane.f32.xlu0 %v1006
        %v1008 = vpop.xlane.xlu0 %1007
        %v1009 = vadd.f32 %v1005, %v1008
        %v1010 = vpack.c.bf16 %v1004, %v1004
        %1011 = vrot.lane.b32.xlu0 %v602, 48
        %v1012 = vpop.permute.xlu0 %1011
        %v1014 = vsel %vm606, %v1010, 0
        %v1017 = vsel %vm682, %v1012, 0
        %1019 = vmatprep.subr.bf16.mxu0 0
        %1020 = vmatpush1.bf16.msra.mxu0 %v1017
        %1021 = vmatprep.subr.bf16.mxu0 0
        %1022 = vmatpush1.bf16.msra.mxu0 0
        %1023 = vmatprep.subr.bf16.mxu0 0
        %1024 = vmatpush1.bf16.msra.mxu0 0
        %1025 = vmatprep.subr.bf16.mxu0 0
        %1026 = vmatpush1.bf16.msra.mxu0 0
        %1027 = vmatprep.subr.bf16.mxu0 0
        %1028 = vmatpush1.bf16.msra.mxu0 0
        %1029 = vmatprep.subr.bf16.mxu0 0
        %1030 = vmatpush1.bf16.msra.mxu0 0
        %1031 = vmatprep.subr.bf16.mxu0 0
        %1032 = vmatpush1.bf16.msra.mxu0 0
        %1033 = vmatprep.subr.bf16.mxu0 0
        %1034 = vmatpush1.bf16.msra.mxu0 0
        %1035 = vmatprep.subr.bf16.mxu0 0
        %1036 = vmatpush1.bf16.msra.mxu0 0
        %1037 = vmatprep.subr.bf16.mxu0 0
        %1038 = vmatpush1.bf16.msra.mxu0 0
        %1039 = vmatprep.subr.bf16.mxu0 0
        %1040 = vmatpush1.bf16.msra.mxu0 0
        %1041 = vmatprep.subr.bf16.mxu0 0
        %1042 = vmatpush1.bf16.msra.mxu0 0
        %1043 = vmatprep.subr.bf16.mxu0 0
        %1044 = vmatpush1.bf16.msra.mxu0 0
        %1045 = vmatprep.subr.bf16.mxu0 0
        %1046 = vmatpush1.bf16.msra.mxu0 0
        %1047 = vmatprep.subr.bf16.mxu0 0
        %1048 = vmatpush1.bf16.msra.mxu0 0
        %1049 = vmatprep.subr.bf16.mxu0 0
        %1050 = vmatpush1.bf16.msra.mxu0 0
        %1051 = vmatprep.mubr.bf16.mxu0 0
        %1052 = vmatmul.mubr.bf16.gmra.mrb[0].mxu0 %v1014
        %v1053 = vpop.f32.mrb[0].mxu0
        %v1054 = vadd.f32 0.0, %v1053
        %v1055 = vpop.f32.mrb[0].mxu0
        %v1056 = vpop.f32.mrb[0].mxu0
        %v1057 = vpop.f32.mrb[0].mxu0
        %1058 = vdwg.mxu0
        %v1059 = vadd.f32 %v1005, %v1054
        %v1060 = vrcp.pop %v1009
        %v1061 = vmul.f32 1.0, %v1060
        %v1062 = vmul.f32 %v1059, %v1061
        %v1063 = vpack.c.bf16 %v1062, %v1062
        %v1065 = vsel %vm606, %v1063, 0
        %v1068 = vsel %vm682, %v532, 0
        %1070 = vmatprep.subr.bf16.mxu0 0
        %1071 = vmatpush1.bf16.msra.mxu0 %v1068
        %1072 = vmatprep.subr.bf16.mxu0 0
        %1073 = vmatpush1.bf16.msra.mxu0 0
        %1074 = vmatprep.subr.bf16.mxu0 0
        %1075 = vmatpush1.bf16.msra.mxu0 0
        %1076 = vmatprep.subr.bf16.mxu0 0
        %1077 = vmatpush1.bf16.msra.mxu0 0
        %1078 = vmatprep.subr.bf16.mxu0 0
        %1079 = vmatpush1.bf16.msra.mxu0 0
        %1080 = vmatprep.subr.bf16.mxu0 0
        %1081 = vmatpush1.bf16.msra.mxu0 0
        %1082 = vmatprep.subr.bf16.mxu0 0
        %1083 = vmatpush1.bf16.msra.mxu0 0
        %1084 = vmatprep.subr.bf16.mxu0 0
        %1085 = vmatpush1.bf16.msra.mxu0 0
        %1086 = vmatprep.subr.bf16.mxu0 0
        %1087 = vmatpush1.bf16.msra.mxu0 0
        %1088 = vmatprep.subr.bf16.mxu0 0
        %1089 = vmatpush1.bf16.msra.mxu0 0
        %1090 = vmatprep.subr.bf16.mxu0 0
        %1091 = vmatpush1.bf16.msra.mxu0 0
        %1092 = vmatprep.subr.bf16.mxu0 0
        %1093 = vmatpush1.bf16.msra.mxu0 0
        %1094 = vmatprep.subr.bf16.mxu0 0
        %1095 = vmatpush1.bf16.msra.mxu0 0
        %1096 = vmatprep.subr.bf16.mxu0 0
        %1097 = vmatpush1.bf16.msra.mxu0 0
        %1098 = vmatprep.subr.bf16.mxu0 0
        %1099 = vmatpush1.bf16.msra.mxu0 0
        %1100 = vmatprep.subr.bf16.mxu0 0
        %1101 = vmatpush1.bf16.msra.mxu0 0
        %1102 = vmatprep.mubr.bf16.mxu0 0
        %1103 = vmatmul.mubr.bf16.gmra.mrb[0].mxu0 %v1065
        %v1104 = vpop.f32.mrb[0].mxu0
        %v1105 = vadd.f32 0.0, %v1104
        %v1106 = vpop.f32.mrb[0].mxu0
        %v1107 = vpop.f32.mrb[0].mxu0
        %v1108 = vpop.f32.mrb[0].mxu0
        %1109 = vdwg.mxu0
        %v1110 = vadd.f32 %v939, %v1105
        %1111 = vrot.lane.b32.xlu0 %v601, 104
        %v1112 = vpop.permute.xlu0 %1111
        %1113 = vrot.lane.b32.xlu0 %v602, 72
        %v1114 = vpop.permute.xlu0 %1113
        %v1116 = vsel %vm606, %v1112, 0
        %v1119 = vsel %vm606, %v1114, 0
        %1121 = vmatprep.subr.bf16.mxu0 0
        %1122 = vmatpush1.bf16.xpose.msra.mxu0 %v1119
        %1123 = vmatprep.subr.bf16.mxu0 0
        %1124 = vmatpush1.bf16.xpose.msra.mxu0 0
        %1125 = vmatprep.subr.bf16.mxu0 0
        %1126 = vmatpush1.bf16.xpose.msra.mxu0 0
        %1127 = vmatprep.subr.bf16.mxu0 0
        %1128 = vmatpush1.bf16.xpose.msra.mxu0 0
        %1129 = vmatprep.subr.bf16.mxu0 0
        %1130 = vmatpush1.bf16.xpose.msra.mxu0 0
        %1131 = vmatprep.subr.bf16.mxu0 0
        %1132 = vmatpush1.bf16.xpose.msra.mxu0 0
        %1133 = vmatprep.subr.bf16.mxu0 0
        %1134 = vmatpush1.bf16.xpose.msra.mxu0 0
        %1135 = vmatprep.subr.bf16.mxu0 0
        %1136 = vmatpush1.bf16.xpose.msra.mxu0 0
        %1137 = vmatprep.subr.bf16.mxu0 0
        %1138 = vmatpush1.bf16.xpose.msra.mxu0 0
        %1139 = vmatprep.subr.bf16.mxu0 0
        %1140 = vmatpush1.bf16.xpose.msra.mxu0 0
        %1141 = vmatprep.subr.bf16.mxu0 0
        %1142 = vmatpush1.bf16.xpose.msra.mxu0 0
        %1143 = vmatprep.subr.bf16.mxu0 0
        %1144 = vmatpush1.bf16.xpose.msra.mxu0 0
        %1145 = vmatprep.subr.bf16.mxu0 0
        %1146 = vmatpush1.bf16.xpose.msra.mxu0 0
        %1147 = vmatprep.subr.bf16.mxu0 0
        %1148 = vmatpush1.bf16.xpose.msra.mxu0 0
        %1149 = vmatprep.subr.bf16.mxu0 0
        %1150 = vmatpush1.bf16.xpose.msra.mxu0 0
        %1151 = vmatprep.subr.bf16.mxu0 0
        %1152 = vmatpush1.bf16.xpose.msra.mxu0 0
        %1153 = vmatprep.mubr.bf16.mxu0 0
        %1154 = vmatmul.mubr.bf16.gmra.mrb[0].mxu0 %v1116
        %v1155 = vpop.f32.mrb[0].mxu0
        %v1156 = vadd.f32 0.0, %v1155
        %v1157 = vpop.f32.mrb[0].mxu0
        %v1158 = vpop.f32.mrb[0].mxu0
        %v1159 = vpop.f32.mrb[0].mxu0
        %1160 = vdwg.mxu0
        %v1161 = vsel %vm659, -1e+30, %v1156
        %v1162 = vsel %vm606, %v1161, -inf
        %1163 = vmax.xlane.f32.xlu0 %v1162
        %v1164 = vpop.xlane.xlu0 %1163
        %v1165 = vmax.f32 %v1164, -1e+30
        %v1166 = vsub.f32 -1e+30, %v1165
        %v1167 = vmul.f32 %v1166, 1.442695
        %v1168 = vpow.pop %v1167
        %v1169 = vsub.f32 %v1161, %v1165
        %v1170 = vmul.f32 %v1169, 1.442695
        %v1171 = vpow.pop %v1170
        %v1172 = vmul.f32 %v1168, 0.0
        %v1173 = vsel %vm606, %v1171, 0.0
        %1174 = vadd.xlane.f32.xlu0 %v1173
        %v1175 = vpop.xlane.xlu0 %1174
        %v1176 = vadd.f32 %v1172, %v1175
        %v1177 = vpack.c.bf16 %v1171, %v1171
        %1178 = vrot.lane.b32.xlu0 %v602, 40
        %v1179 = vpop.permute.xlu0 %1178
        %v1181 = vsel %vm606, %v1177, 0
        %v1184 = vsel %vm682, %v1179, 0
        %1186 = vmatprep.subr.bf16.mxu0 0
        %1187 = vmatpush1.bf16.msra.mxu0 %v1184
        %1188 = vmatprep.subr.bf16.mxu0 0
        %1189 = vmatpush1.bf16.msra.mxu0 0
        %1190 = vmatprep.subr.bf16.mxu0 0
        %1191 = vmatpush1.bf16.msra.mxu0 0
        %1192 = vmatprep.subr.bf16.mxu0 0
        %1193 = vmatpush1.bf16.msra.mxu0 0
        %1194 = vmatprep.subr.bf16.mxu0 0
        %1195 = vmatpush1.bf16.msra.mxu0 0
        %1196 = vmatprep.subr.bf16.mxu0 0
        %1197 = vmatpush1.bf16.msra.mxu0 0
        %1198 = vmatprep.subr.bf16.mxu0 0
        %1199 = vmatpush1.bf16.msra.mxu0 0
        %1200 = vmatprep.subr.bf16.mxu0 0
        %1201 = vmatpush1.bf16.msra.mxu0 0
        %1202 = vmatprep.subr.bf16.mxu0 0
        %1203 = vmatpush1.bf16.msra.mxu0 0
        %1204 = vmatprep.subr.bf16.mxu0 0
        %1205 = vmatpush1.bf16.msra.mxu0 0
        %1206 = vmatprep.subr.bf16.mxu0 0
        %1207 = vmatpush1.bf16.msra.mxu0 0
        %1208 = vmatprep.subr.bf16.mxu0 0
        %1209 = vmatpush1.bf16.msra.mxu0 0
        %1210 = vmatprep.subr.bf16.mxu0 0
        %1211 = vmatpush1.bf16.msra.mxu0 0
        %1212 = vmatprep.subr.bf16.mxu0 0
        %1213 = vmatpush1.bf16.msra.mxu0 0
        %1214 = vmatprep.subr.bf16.mxu0 0
        %1215 = vmatpush1.bf16.msra.mxu0 0
        %1216 = vmatprep.subr.bf16.mxu0 0
        %1217 = vmatpush1.bf16.msra.mxu0 0
        %1218 = vmatprep.mubr.bf16.mxu0 0
        %1219 = vmatmul.mubr.bf16.gmra.mrb[0].mxu0 %v1181
        %v1220 = vpop.f32.mrb[0].mxu0
        %v1221 = vadd.f32 0.0, %v1220
        %v1222 = vpop.f32.mrb[0].mxu0
        %v1223 = vpop.f32.mrb[0].mxu0
        %v1224 = vpop.f32.mrb[0].mxu0
        %1225 = vdwg.mxu0
        %v1226 = vadd.f32 %v1172, %v1221
        %v1227 = vrcp.pop %v1176
        %v1228 = vmul.f32 1.0, %v1227
        %v1229 = vmul.f32 %v1226, %v1228
        %v1230 = vpack.c.bf16 %v1229, %v1229
        %v1232 = vsel %vm606, %v1230, 0
        %v1235 = vsel %vm682, %v533, 0
        %1237 = vmatprep.subr.bf16.mxu0 0
        %1238 = vmatpush1.bf16.msra.mxu0 %v1235
        %1239 = vmatprep.subr.bf16.mxu0 0
        %1240 = vmatpush1.bf16.msra.mxu0 0
        %1241 = vmatprep.subr.bf16.mxu0 0
        %1242 = vmatpush1.bf16.msra.mxu0 0
        %1243 = vmatprep.subr.bf16.mxu0 0
        %1244 = vmatpush1.bf16.msra.mxu0 0
        %1245 = vmatprep.subr.bf16.mxu0 0
        %1246 = vmatpush1.bf16.msra.mxu0 0
        %1247 = vmatprep.subr.bf16.mxu0 0
        %1248 = vmatpush1.bf16.msra.mxu0 0
        %1249 = vmatprep.subr.bf16.mxu0 0
        %1250 = vmatpush1.bf16.msra.mxu0 0
        %1251 = vmatprep.subr.bf16.mxu0 0
        %1252 = vmatpush1.bf16.msra.mxu0 0
        %1253 = vmatprep.subr.bf16.mxu0 0
        %1254 = vmatpush1.bf16.msra.mxu0 0
        %1255 = vmatprep.subr.bf16.mxu0 0
        %1256 = vmatpush1.bf16.msra.mxu0 0
        %1257 = vmatprep.subr.bf16.mxu0 0
        %1258 = vmatpush1.bf16.msra.mxu0 0
        %1259 = vmatprep.subr.bf16.mxu0 0
        %1260 = vmatpush1.bf16.msra.mxu0 0
        %1261 = vmatprep.subr.bf16.mxu0 0
        %1262 = vmatpush1.bf16.msra.mxu0 0
        %1263 = vmatprep.subr.bf16.mxu0 0
        %1264 = vmatpush1.bf16.msra.mxu0 0
        %1265 = vmatprep.subr.bf16.mxu0 0
        %1266 = vmatpush1.bf16.msra.mxu0 0
        %1267 = vmatprep.subr.bf16.mxu0 0
        %1268 = vmatpush1.bf16.msra.mxu0 0
        %1269 = vmatprep.mubr.bf16.mxu0 0
        %1270 = vmatmul.mubr.bf16.gmra.mrb[0].mxu0 %v1232
        %v1271 = vpop.f32.mrb[0].mxu0
        %v1272 = vadd.f32 0.0, %v1271
        %v1273 = vpop.f32.mrb[0].mxu0
        %v1274 = vpop.f32.mrb[0].mxu0
        %v1275 = vpop.f32.mrb[0].mxu0
        %1276 = vdwg.mxu0
        %v1277 = vadd.f32 %v1110, %v1272
        %v1279 = vlaneseq
        %v1280 = vshrl.u32 %v1279, 7
        %v1281 = vsub.s32 0, %v1280
        %v1282 = vrot.slane %v534, %v1281
        %v1284 = vadd.f32 %v1277, %v1282
        %v1285 = vadd.f32 %v1284, %v600
        %v1286 = vsel %vm555, %v1285, 0.0
        %1287 = vadd.xlane.f32.xlu0 %v1286
        %v1288 = vpop.xlane.xlu0 %1287
        %v1289 = vrcp.pop 32.0
        %v1290 = vmul.f32 %v1288, %v1289
        %v1291 = vsub.f32 %v1285, %v1290
        %v1292 = vmul.f32 %v1291, %v1291
        %v1293 = vsel %vm555, %v1292, 0.0
        %1294 = vadd.xlane.f32.xlu0 %v1293
        %v1295 = vpop.xlane.xlu0 %1294
        %v1296 = vmul.f32 %v1295, %v1289
        %v1297 = vadd.f32 %v1296, 1e-05
        %v1298 = vrsqrt.pop %v1297
        %v1299 = vmul.f32 %v1291, %v1298
        %v1301 = vlaneseq
        %v1302 = vshrl.u32 %v1301, 7
        %v1303 = vsub.s32 0, %v1302
        %v1304 = vrot.slane %v535, %v1303
        %v1306 = vmul.f32 %v1299, %v1304
        %v1308 = vlaneseq
        %v1309 = vshrl.u32 %v1308, 7
        %v1310 = vsub.s32 0, %v1309
        %v1311 = vrot.slane %v536, %v1310
        %v1313 = vadd.f32 %v1306, %v1311
        %1315 = vset.pattern.permute.xlu0 0
        %1316 = vperm.xlu0 %1315, %v524
        %v1317 = vpop.permute.xlu0 %1316
        %v1319 = vmul.f32 %v1313, %v1317
        %v1320 = vld [vmem:[%s9] sm:$0xf]
        %v1321 = vld [vmem:[%s9 + $0x4] sm:$0xf]
        %v1322 = vld [vmem:[%s9 + $0x8] sm:$0xf]
        %v1323 = vld [vmem:[%s9 + $0xc] sm:$0xf]
        %v1324 = vld [vmem:[%s10] sm:$0x1]
        %v1325 = vld [vmem:[%s11] sm:$0xf]
        %v1326 = vld [vmem:[%s11 + $0x4] sm:$0xf]
        %v1327 = vld [vmem:[%s11 + $0x8] sm:$0xf]
        %v1328 = vld [vmem:[%s11 + $0xc] sm:$0xf]
        %v1329 = vld [vmem:[%s11 + $0x10] sm:$0xf]
        %v1330 = vld [vmem:[%s11 + $0x14] sm:$0xf]
        %v1331 = vld [vmem:[%s11 + $0x18] sm:$0xf]
        %v1332 = vld [vmem:[%s11 + $0x1c] sm:$0xf]
        %v1333 = vld [vmem:[%s11 + $0x20] sm:$0xf]
        %v1334 = vld [vmem:[%s11 + $0x24] sm:$0xf]
        %v1335 = vld [vmem:[%s11 + $0x28] sm:$0xf]
        %v1336 = vld [vmem:[%s11 + $0x2c] sm:$0xf]
        %v1337 = vld [vmem:[%s11 + $0x30] sm:$0xf]
        %v1338 = vld [vmem:[%s11 + $0x34] sm:$0xf]
        %v1339 = vld [vmem:[%s11 + $0x38] sm:$0xf]
        %v1340 = vld [vmem:[%s11 + $0x3c] sm:$0xf]
        %v1341 = vld [vmem:[%s12] sm:$0x1]
        %v1342 = vld [vmem:[%s13] sm:$0x1]
        %v1343 = vld [vmem:[%s14] sm:$0x1]
        %v1344 = vpack.c.bf16 %v1319, %v1319
        %v1346 = vlaneseq
        %v1347 = vshrl.u32 %v1346, 7
        %v1348 = vsub.s32 0, %v1347
        %v1349 = vrot.slane %v1324, %v1348
        %v1355 = vunpack.c.l.b16 %v1320
        %v1356 = vunpack.c.l.b16 %v1321
        %v1357 = vunpack.c.l.b16 %v1322
        %v1358 = vunpack.c.l.b16 %v1323
        %v1359 = vpack.c.b16 %v1356, %v1355
        %v1360 = vpack.c.b16 %v1358, %v1357
        %v1364 = vsel %vm555, %v1344, 0
        %1366 = vmatprep.subr.bf16.mxu0 0
        %1367 = vmatpush1.bf16.msra.mxu0 %v1359
        %1368 = vmatprep.subr.bf16.mxu0 0
        %1369 = vmatpush1.bf16.msra.mxu0 %v1360
        %1370 = vmatprep.subr.bf16.mxu0 0
        %1371 = vmatpush1.bf16.msra.mxu0 0
        %1372 = vmatprep.subr.bf16.mxu0 0
        %1373 = vmatpush1.bf16.msra.mxu0 0
        %1374 = vmatprep.subr.bf16.mxu0 0
        %1375 = vmatpush1.bf16.msra.mxu0 0
        %1376 = vmatprep.subr.bf16.mxu0 0
        %1377 = vmatpush1.bf16.msra.mxu0 0
        %1378 = vmatprep.subr.bf16.mxu0 0
        %1379 = vmatpush1.bf16.msra.mxu0 0
        %1380 = vmatprep.subr.bf16.mxu0 0
        %1381 = vmatpush1.bf16.msra.mxu0 0
        %1382 = vmatprep.subr.bf16.mxu0 0
        %1383 = vmatpush1.bf16.msra.mxu0 0
        %1384 = vmatprep.subr.bf16.mxu0 0
        %1385 = vmatpush1.bf16.msra.mxu0 0
        %1386 = vmatprep.subr.bf16.mxu0 0
        %1387 = vmatpush1.bf16.msra.mxu0 0
        %1388 = vmatprep.subr.bf16.mxu0 0
        %1389 = vmatpush1.bf16.msra.mxu0 0
        %1390 = vmatprep.subr.bf16.mxu0 0
        %1391 = vmatpush1.bf16.msra.mxu0 0
        %1392 = vmatprep.subr.bf16.mxu0 0
        %1393 = vmatpush1.bf16.msra.mxu0 0
        %1394 = vmatprep.subr.bf16.mxu0 0
        %1395 = vmatpush1.bf16.msra.mxu0 0
        %1396 = vmatprep.subr.bf16.mxu0 0
        %1397 = vmatpush1.bf16.msra.mxu0 0
        %1398 = vmatprep.mubr.bf16.mxu0 0
        %1399 = vmatmul.mubr.bf16.gmra.mrb[0].mxu0 %v1364
        %v1400 = vpop.f32.mrb[0].mxu0
        %v1401 = vadd.f32 %v1349, %v1400
        %v1402 = vpop.f32.mrb[0].mxu0
        %v1403 = vpop.f32.mrb[0].mxu0
        %v1404 = vpop.f32.mrb[0].mxu0
        %1405 = vdwg.mxu0
        %v1406 = vmax.f32 %v1401, 0.0
        %v1407 = vpack.c.bf16 %v1406, %v1406
        %v1409 = vlaneseq
        %v1410 = vshrl.u32 %v1409, 7
        %v1411 = vsub.s32 0, %v1410
        %v1412 = vrot.slane %v1341, %v1411
        %v1430 = vunpack.c.l.b16 %v1325
        %v1431 = vunpack.c.l.b16 %v1326
        %v1432 = vunpack.c.l.b16 %v1327
        %v1433 = vunpack.c.l.b16 %v1328
        %v1434 = vunpack.c.l.b16 %v1329
        %v1435 = vunpack.c.l.b16 %v1330
        %v1436 = vunpack.c.l.b16 %v1331
        %v1437 = vunpack.c.l.b16 %v1332
        %v1438 = vunpack.c.l.b16 %v1333
        %v1439 = vunpack.c.l.b16 %v1334
        %v1440 = vunpack.c.l.b16 %v1335
        %v1441 = vunpack.c.l.b16 %v1336
        %v1442 = vunpack.c.l.b16 %v1337
        %v1443 = vunpack.c.l.b16 %v1338
        %v1444 = vunpack.c.l.b16 %v1339
        %v1445 = vunpack.c.l.b16 %v1340
        %v1446 = vpack.c.b16 %v1431, %v1430
        %v1447 = vpack.c.b16 %v1433, %v1432
        %v1448 = vpack.c.b16 %v1435, %v1434
        %v1449 = vpack.c.b16 %v1437, %v1436
        %v1450 = vpack.c.b16 %v1439, %v1438
        %v1451 = vpack.c.b16 %v1441, %v1440
        %v1452 = vpack.c.b16 %v1443, %v1442
        %v1453 = vpack.c.b16 %v1445, %v1444
        %1462 = vmatprep.subr.bf16.mxu0 0
        %1463 = vmatpush1.bf16.msra.mxu0 %v1446
        %1464 = vmatprep.subr.bf16.mxu0 0
        %1465 = vmatpush1.bf16.msra.mxu0 %v1447
        %1466 = vmatprep.subr.bf16.mxu0 0
        %1467 = vmatpush1.bf16.msra.mxu0 %v1448
        %1468 = vmatprep.subr.bf16.mxu0 0
        %1469 = vmatpush1.bf16.msra.mxu0 %v1449
        %1470 = vmatprep.subr.bf16.mxu0 0
        %1471 = vmatpush1.bf16.msra.mxu0 %v1450
        %1472 = vmatprep.subr.bf16.mxu0 0
        %1473 = vmatpush1.bf16.msra.mxu0 %v1451
        %1474 = vmatprep.subr.bf16.mxu0 0
        %1475 = vmatpush1.bf16.msra.mxu0 %v1452
        %1476 = vmatprep.subr.bf16.mxu0 0
        %1477 = vmatpush1.bf16.msra.mxu0 %v1453
        %1478 = vmatprep.subr.bf16.mxu0 0
        %1479 = vmatpush1.bf16.msra.mxu0 0
        %1480 = vmatprep.subr.bf16.mxu0 0
        %1481 = vmatpush1.bf16.msra.mxu0 0
        %1482 = vmatprep.subr.bf16.mxu0 0
        %1483 = vmatpush1.bf16.msra.mxu0 0
        %1484 = vmatprep.subr.bf16.mxu0 0
        %1485 = vmatpush1.bf16.msra.mxu0 0
        %1486 = vmatprep.subr.bf16.mxu0 0
        %1487 = vmatpush1.bf16.msra.mxu0 0
        %1488 = vmatprep.subr.bf16.mxu0 0
        %1489 = vmatpush1.bf16.msra.mxu0 0
        %1490 = vmatprep.subr.bf16.mxu0 0
        %1491 = vmatpush1.bf16.msra.mxu0 0
        %1492 = vmatprep.subr.bf16.mxu0 0
        %1493 = vmatpush1.bf16.msra.mxu0 0
        %1494 = vmatprep.mubr.bf16.mxu0 0
        %1495 = vmatmul.mubr.bf16.gmra.mrb[0].mxu0 %v1407
        %v1496 = vpop.f32.mrb[0].mxu0
        %v1497 = vadd.f32 %v1412, %v1496
        %v1498 = vpop.f32.mrb[0].mxu0
        %v1499 = vpop.f32.mrb[0].mxu0
        %v1500 = vpop.f32.mrb[0].mxu0
        %1501 = vdwg.mxu0
        %v1502 = vadd.f32 %v1497, %v1319
        %v1503 = vsel %vm555, %v1502, 0.0
        %1504 = vadd.xlane.f32.xlu0 %v1503
        %v1505 = vpop.xlane.xlu0 %1504
        %v1506 = vmul.f32 %v1505, %v1289
        %v1507 = vsub.f32 %v1502, %v1506
        %v1508 = vmul.f32 %v1507, %v1507
        %v1509 = vsel %vm555, %v1508, 0.0
        %1510 = vadd.xlane.f32.xlu0 %v1509
        %v1511 = vpop.xlane.xlu0 %1510
        %v1512 = vmul.f32 %v1511, %v1289
        %v1513 = vadd.f32 %v1512, 1e-05
        %v1514 = vrsqrt.pop %v1513
        %v1515 = vmul.f32 %v1507, %v1514
        %v1517 = vlaneseq
        %v1518 = vshrl.u32 %v1517, 7
        %v1519 = vsub.s32 0, %v1518
        %v1520 = vrot.slane %v1342, %v1519
        %v1522 = vmul.f32 %v1515, %v1520
        %v1524 = vlaneseq
        %v1525 = vshrl.u32 %v1524, 7
        %v1526 = vsub.s32 0, %v1525
        %v1527 = vrot.slane %v1343, %v1526
        %v1529 = vadd.f32 %v1522, %v1527
        %v1530 = vmul.f32 %v1529, %v1317
        %v1531 = vpack.c.bf16 %v1530, %v1530
        %vm1532 = vcmask 257024
        %1533 = vst.msk [vmem:[%s509] sm:$0xf] %vm1532, %v1531
        %s1534 = sand.u32 %s367, 1
        %s1535 = scalar_lea.sflag [#allocation3], %s1534
        %s1536 = sand.u32 %s367, 1
        %s1537 = smul.addr %s1536, 4
        %s1538 = scalar_lea.vmem [#allocation2], %s1537
        // Predicated region
        $region81: #{tpu_custom_call.1} parent=79 // pred_check
          %p1539 = pneg %p377
        $region82: #{tpu_custom_call.1} parent=79 // pred_check_branch
          %1541 = sbr.rel (%p1539) target = $region84
        $region83: #{tpu_custom_call.1} parent=79 // pred_region
          %s1543 = ssub.s32 64, 64
          %1544 = vsyncadd %s1535, %s1543
          %s1545 = smul.addr %s29, 64
          %s1546 = scalar_lea.hbm %s15, %s1545
          %s1548 = sshll.u32 %s1538, 4
          %s1549 = int_to_ptr.vmem [resolvable:$true] %s1548
          %1551 = dma.vmem_to_hbm [thread:$0]  %s1549, 64, %s1546, %s1535
        $region84: #{tpu_custom_call.1} parent=79 // pred_fallthru
          _
      $region80: #{tpu_custom_call.1} parent=5 // pred_fallthru
        _
      %p1552 = scmp.le.s32.totalorder 2, %s24
      // Predicated region
      $region85: #{tpu_custom_call.1} parent=5 // pred_check
        %p1553 = pneg %p1552
      $region86: #{tpu_custom_call.1} parent=5 // pred_check_branch
        %1555 = sbr.rel (%p1553) target = $region88
      $region87: #{tpu_custom_call.1} parent=5 // pred_region
        %s1556 = ssub.s32 %s24, 2
        // Predicated region
        $region89: #{tpu_custom_call.1} parent=87 // pred_check
          %p1557 = pneg %p383
        $region90: #{tpu_custom_call.1} parent=87 // pred_check_branch
          %1559 = sbr.rel (%p1557) target = $region92
        $region91: #{tpu_custom_call.1} parent=87 // pred_region
          %s1560 = sand.u32 %s368, 1
          %s1561 = scalar_lea.sflag [#allocation3], %s1560
          %s1562 = sand.u32 %s368, 1
          %s1563 = smul.addr %s1562, 4
          %s1564 = scalar_lea.vmem [#allocation2], %s1563
          %1565 = dma.done %s1561, 64
        $region92: #{tpu_custom_call.1} parent=87 // pred_fallthru
          _
      $region88: #{tpu_custom_call.1} parent=5 // pred_fallthru
        _
    $region6: #{tpu_custom_call.1} parent=1 // loop_footer
      %s28 = sadd.s32 1, %s24
    $region7: #{tpu_custom_call.1} parent=1 // loop_footer_branch
      %23 = sbr.rel target = $region3
    $region8: #{tpu_custom_call.1} parent=1 // loop_exit
      _
    %1566 = vsyncpa [#allocation3], 1
    %s1567 = scalar_lea.sflag [#allocation3], 1
    %1568 = vsyncpa %s1567, 1

</llo_original>
